<compile_context>
chip_gen: v5e
topology: v5e:2x2
jax: 0.10.0
libtpu: 0.0.40
codegen_flags: <defaults>
</compile_context>

<pallas_src>
import numpy as np

import jax
import jax.numpy as jnp
from jax.experimental import pallas as pl
from jax.experimental.pallas import tpu as pltpu


def _round_up(x, m):
    return (x + m - 1) // m * m


# ----------------------------------------------------------------------------
# Pallas kernels
# ----------------------------------------------------------------------------

def _conv_relu_pool_kernel(c_ref, w_ref, b_ref, o_ref):
    """One conv block: single stacked-corner matmul, max over corners, +bias, ReLU.

    c_ref : (4*Mp, Kp) bf16 -- the four pooling-corner im2col matrices stacked
            along the row axis (Mp rows each, Mp multiple of 8).
    w_ref : (Kp, 128) bf16 zero-padded conv weight.
    b_ref : (1, 128)  f32  zero-padded bias.
    o_ref : (Mp, 128) bf16 pooled+ReLU'd activations (rows (b, ph, pw)).
    """
    mp = o_ref.shape[0]
    # One MXU pass for all four corners; f32 accumulator.
    y = jnp.dot(c_ref[...], w_ref[...], preferred_element_type=jnp.float32)
    # 2x2 max-pool == elementwise max over the four corner matmuls
    # (bias factored out of the max; ReLU after -- both identities are exact).
    m = jnp.maximum(jnp.maximum(y[0 * mp:1 * mp, :], y[1 * mp:2 * mp, :]),
                    jnp.maximum(y[2 * mp:3 * mp, :], y[3 * mp:4 * mp, :]))
    o_ref[...] = jnp.maximum(m + b_ref[...], 0.0).astype(o_ref.dtype)


def _fc_stack_kernel(x_ref, w1_ref, b1_ref, w2_ref, b2_ref, w3_ref, b3_ref, o_ref):
    """fc1 + ReLU + fc2 + ReLU + fc3; intermediates never leave VMEM.

    Weights bf16, accumulation f32, elementwise math f32, re-cast to bf16 only
    as the LHS of the next matmul.  Output logits f32.
    """
    h = jnp.dot(x_ref[...], w1_ref[...], preferred_element_type=jnp.float32) + b1_ref[...]
    h = jnp.maximum(h, 0.0).astype(jnp.bfloat16)
    h = jnp.dot(h, w2_ref[...], preferred_element_type=jnp.float32) + b2_ref[...]
    h = jnp.maximum(h, 0.0).astype(jnp.bfloat16)
    o_ref[...] = jnp.dot(h, w3_ref[...], preferred_element_type=jnp.float32) + b3_ref[...]


# ----------------------------------------------------------------------------
# pallas_call wrappers
# ----------------------------------------------------------------------------

def pallas_conv_relu_pool(corners, w_mat, b_mat, mp):
    """corners: (4*Mp, Kp) bf16, w_mat: (Kp, 128) bf16, b_mat: (1, 128) f32."""
    kp_dim = corners.shape[1]
    return pl.pallas_call(
        _conv_relu_pool_kernel,
        out_shape=jax.ShapeDtypeStruct((mp, 128), jnp.bfloat16),
        grid=(1,),
        in_specs=[
            pl.BlockSpec((4 * mp, kp_dim), lambda i: (0, 0)),
            pl.BlockSpec((kp_dim, 128), lambda i: (0, 0)),
            pl.BlockSpec((1, 128), lambda i: (0, 0)),
        ],
        out_specs=pl.BlockSpec((mp, 128), lambda i: (0, 0)),
        compiler_params=pltpu.CompilerParams(dimension_semantics=("arbitrary",)),
    )(corners, w_mat, b_mat)


def pallas_fc_stack(x, kp):
    """y = fc3(relu(fc2(relu(fc1(x))))) in one pallas_call; x: (Bp, 512) bf16."""
    bp = x.shape[0]
    ncp = kp["fc3_w"].shape[1]
    args = (x, kp["fc1_w"], kp["fc1_b"], kp["fc2_w"], kp["fc2_b"],
            kp["fc3_w"], kp["fc3_b"])
    return pl.pallas_call(
        _fc_stack_kernel,
        out_shape=jax.ShapeDtypeStruct((bp, ncp), jnp.float32),
        grid=(1,),
        in_specs=[pl.BlockSpec(a.shape, lambda i: (0, 0)) for a in args],
        out_specs=pl.BlockSpec((bp, ncp), lambda i: (0, 0)),
        compiler_params=pltpu.CompilerParams(dimension_semantics=("arbitrary",)),
    )(*args)


# ----------------------------------------------------------------------------
# XLA-side glue (fused under jit): im2col split into 2x2-pool corners
# ----------------------------------------------------------------------------

def _stack_pool_corners(x, k, mp, kp_dim, channels_last):
    """Build the stacked (4*Mp, Kp) corner patch matrix for a conv+pool block.

    Rows ordered (b, ph, pw), columns ordered (ic, kh, kw) to match the torch
    Conv2d weight.reshape(OC, -1).  Zero-padded to (Mp, Kp) per corner, stacked
    along rows, cast to bf16.  Plain JAX; XLA fuses it into one copy.
    NOTE: at large batch this 25x im2col expansion should move in-kernel
    (build shifted views from a VMEM-resident tile); at B=2 it is noise.
    """
    if channels_last:
        b, h, w, c = x.shape
    else:
        b, c, h, w = x.shape
    oh, ow = h - k + 1, w - k + 1
    ph, pw = oh // 2, ow // 2
    kk = c * k * k
    m = b * ph * pw
    corners = []
    for dh in range(2):
        for dw in range(2):
            if channels_last:
                slabs = [x[:, dh + i:dh + i + 2 * ph:2, dw + j:dw + j + 2 * pw:2, :]
                         for i in range(k) for j in range(k)]
                p = jnp.stack(slabs, axis=-1)                  # (B,PH,PW,C,k*k)
                p = p.reshape(m, kk)                           # col = ic*k*k + kh*k + kw
            else:
                slabs = [x[:, :, dh + i:dh + i + 2 * ph:2, dw + j:dw + j + 2 * pw:2]
                         for i in range(k) for j in range(k)]
                p = jnp.stack(slabs, axis=2).reshape(b, kk, ph, pw)
                p = jnp.transpose(p, (0, 2, 3, 1)).reshape(m, kk)
            corners.append(jnp.pad(p, ((0, mp - m), (0, kp_dim - kk))))
    return jnp.concatenate(corners, axis=0).astype(jnp.bfloat16)


# ----------------------------------------------------------------------------
# Parameters
# ----------------------------------------------------------------------------

def init_lenet_params(key, num_classes=100):
    """Torch-layout LeNet parameters (conv weights (OC,IC,KH,KW), fc weights (in,out))."""
    ks = jax.random.split(key, 10)

    def _uniform(k, shape, fan_in):
        bound = 1.0 / jnp.sqrt(fan_in)
        return jax.random.uniform(k, shape, jnp.float32, -bound, bound)

    return {
        "conv1_w": _uniform(ks[0], (6, 3, 5, 5), 3 * 5 * 5),
        "conv1_b": _uniform(ks[1], (6,), 3 * 5 * 5),
        "conv2_w": _uniform(ks[2], (16, 6, 5, 5), 6 * 5 * 5),
        "conv2_b": _uniform(ks[3], (16,), 6 * 5 * 5),
        # fc weights stored as (in_features, out_features) == torch_weight.T;
        # fc1 rows indexed in torch NCHW-flatten order (c, h, w).
        "fc1_w": _uniform(ks[4], (16 * 5 * 5, 256), 16 * 5 * 5),
        "fc1_b": _uniform(ks[5], (256,), 16 * 5 * 5),
        "fc2_w": _uniform(ks[6], (256, 128), 256),
        "fc2_b": _uniform(ks[7], (128,), 256),
        "fc3_w": _uniform(ks[8], (128, num_classes), 128),
        "fc3_b": _uniform(ks[9], (100,), 128) if num_classes == 100
                 else _uniform(ks[9], (num_classes,), 128),
    }


def prepare_kernel_params(params, num_classes=100):
    """One-time (offline) weight prep: reshape / permute / zero-pad / cast bf16."""

    def pad2(a, rows, cols):
        return jnp.pad(a, ((0, rows - a.shape[0]), (0, cols - a.shape[1])))

    def conv_prep(w, b):
        oc, ic, kh, kw = w.shape
        k = ic * kh * kw
        kp = _round_up(k, 128)
        w_mat = w.reshape(oc, k).T                       # (K, OC), cols = (ic, kh, kw)
        w_mat = pad2(w_mat, kp, 128).astype(jnp.bfloat16)
        b_mat = pad2(b.reshape(1, oc), 1, 128).astype(jnp.float32)
        return w_mat, b_mat

    c1w, c1b = conv_prep(params["conv1_w"], params["conv1_b"])
    c2w, c2b = conv_prep(params["conv2_w"], params["conv2_b"])

    # fc1: permute rows from torch NCHW-flatten order (c, h, w) to NHWC-flatten
    # order (h, w, c) so the kernel consumes the channels-last conv2 output
    # directly (removes the runtime transpose-back).  Then pad 400 -> 512 rows.
    c2, ph2, pw2 = 16, 5, 5
    hh, ww, cc = np.meshgrid(np.arange(ph2), np.arange(pw2), np.arange(c2), indexing="ij")
    old_rows = (cc * (ph2 * pw2) + hh * pw2 + ww).reshape(-1)
    w1 = params["fc1_w"][old_rows]                       # (400, 256) rows now (h, w, c)
    kf = _round_up(w1.shape[0], 128)                     # 512
    w1 = jnp.pad(w1, ((0, kf - w1.shape[0]), (0, 0))).astype(jnp.bfloat16)
    b1 = params["fc1_b"].reshape(1, -1).astype(jnp.float32)

    w2 = params["fc2_w"].astype(jnp.bfloat16)            # (256, 128) already aligned
    b2 = params["fc2_b"].reshape(1, -1).astype(jnp.float32)

    ncp = _round_up(num_classes, 128)
    w3 = pad2(params["fc3_w"], params["fc3_w"].shape[0], ncp).astype(jnp.bfloat16)
    b3 = pad2(params["fc3_b"].reshape(1, -1), 1, ncp).astype(jnp.float32)

    return {
        "conv1_w": c1w, "conv1_b": c1b,
        "conv2_w": c2w, "conv2_b": c2b,
        "fc1_w": w1, "fc1_b": b1,
        "fc2_w": w2, "fc2_b": b2,
        "fc3_w": w3, "fc3_b": b3,
    }


# ----------------------------------------------------------------------------
# Forward
# ----------------------------------------------------------------------------

def lenet_forward(kp, x, num_classes=100):
    """x: (B, 3, 32, 32) float32 NCHW, kp: prepared kernel params.

    Returns (logits, shape_dict) matching the PyTorch LeNet.forward (sizes
    recorded in NCHW even though activations are carried channels-last).
    """
    b = x.shape[0]
    shape_dict = {}

    # ---- conv1 + ReLU + 2x2 maxpool (one fused pallas_call) ----------------
    m1 = b * 14 * 14
    mp1 = _round_up(m1, 8)
    c1 = _stack_pool_corners(x, 5, mp1, kp["conv1_w"].shape[0], channels_last=False)
    a1 = pallas_conv_relu_pool(c1, kp["conv1_w"], kp["conv1_b"], mp1)   # (Mp1,128) bf16
    shape_dict[1] = [b, 6, 14, 14]

    # ---- conv2 + ReLU + 2x2 maxpool -----------------------------------------
    a1_nhwc = a1[:m1, :6].reshape(b, 14, 14, 6)
    m2 = b * 5 * 5
    mp2 = _round_up(m2, 8)
    c2 = _stack_pool_corners(a1_nhwc, 5, mp2, kp["conv2_w"].shape[0], channels_last=True)
    a2 = pallas_conv_relu_pool(c2, kp["conv2_w"], kp["conv2_b"], mp2)   # (Mp2,128) bf16
    shape_dict[2] = [b, 16, 5, 5]

    # ---- flatten (NHWC order; fc1 rows were permuted to match at prep time) --
    feat = a2[:m2, :16].reshape(b, 400)
    shape_dict[3] = [b, 400]
    bp = _round_up(b, 8)
    kf = kp["fc1_w"].shape[0]                                           # 512
    feat = jnp.pad(feat, ((0, bp - b), (0, kf - feat.shape[1])))        # bf16, zero pad

    # ---- fc1 + ReLU + fc2 + ReLU + fc3 (one fused pallas_call) --------------
    out = pallas_fc_stack(feat, kp)                                     # (Bp, 128) f32
    shape_dict[4] = [b, kp["fc1_w"].shape[1]]
    shape_dict[5] = [b, kp["fc2_w"].shape[1]]
    out = out[:b, :num_classes]
    shape_dict[6] = [b, num_classes]
    return out, shape_dict


if __name__ == "__main__":
    key = jax.random.PRNGKey(0)
    pkey, xkey = jax.random.split(key)

    params = init_lenet_params(pkey, num_classes=100)
    kparams = prepare_kernel_params(params, num_classes=100)   # once, offline

    # LeNet's fc1 hard-codes 16*5*5 features, which requires 32x32 spatial input.
    x = jax.random.normal(xkey, (2, 3, 32, 32), jnp.float32)

    fwd = jax.jit(lenet_forward)
    out, shape_dict = fwd(kparams, x)
    out = jax.block_until_ready(out)
    # jit turns the static python ints in shape_dict into 0-d arrays; normalize.
    shape_dict = {k: [int(d) for d in v] for k, v in shape_dict.items()}

    assert out.shape == (2, 100), out.shape
    assert out.dtype == jnp.float32, out.dtype
    assert shape_dict == {
        1: [2, 6, 14, 14],
        2: [2, 16, 5, 5],
        3: [2, 400],
        4: [2, 256],
        5: [2, 128],
        6: [2, 100],
    }, shape_dict

    print("KERNEL_OK")
</pallas_src>

<mosaic_0001>
module attributes {stable_mosaic.version = 11 : i64} {
  func.func @_conv_relu_pool_kernel(%arg0: i32, %arg1: memref<1568x128xbf16, #tpu.memory_space<vmem>>, %arg2: memref<128x128xbf16, #tpu.memory_space<vmem>>, %arg3: memref<1x128xf32, #tpu.memory_space<vmem>>, %arg4: memref<392x128xbf16, #tpu.memory_space<vmem>>) attributes {dimension_semantics = [#tpu.dimension_semantics<arbitrary>], iteration_bounds = array<i64: 1>, scalar_prefetch = 0 : i64, scratch_operands = 0 : i64, tpu.core_type = #tpu.core_type<tc>, window_params = [{pipeline_mode = #tpu.pipeline_mode<synchronous>, transform_indices = @transform_0, window_bounds = array<i64: 1568, 128>}, {pipeline_mode = #tpu.pipeline_mode<synchronous>, transform_indices = @transform_1, window_bounds = array<i64: 128, 128>}, {pipeline_mode = #tpu.pipeline_mode<synchronous>, transform_indices = @transform_2, window_bounds = array<i64: 1, 128>}, {pipeline_mode = #tpu.pipeline_mode<synchronous>, transform_indices = @transform_3, window_bounds = array<i64: 392, 128>}]} {
    %c0 = arith.constant 0 : index
    %c0_0 = arith.constant 0 : index
    %0 = vector.load %arg1[%c0, %c0_0] : memref<1568x128xbf16, #tpu.memory_space<vmem>>, vector<1568x128xbf16>
    %c0_1 = arith.constant 0 : index
    %c0_2 = arith.constant 0 : index
    %1 = vector.load %arg2[%c0_1, %c0_2] : memref<128x128xbf16, #tpu.memory_space<vmem>>, vector<128x128xbf16>
    %cst = arith.constant dense<0.000000e+00> : vector<1568x128xf32>
    %2 = tpu.matmul %0, %1, %cst {dimension_numbers = #tpu.dot_dimension_numbers<[1], [0], [0], [1], [0, 0, 1, 1], [], []>} : vector<1568x128xbf16>, vector<128x128xbf16>, vector<1568x128xf32> -> vector<1568x128xf32>
    %3 = vector.extract_strided_slice %2 {offsets = [0, 0], sizes = [392, 128], strides = [1, 1]} : vector<1568x128xf32> to vector<392x128xf32>
    %4 = vector.extract_strided_slice %2 {offsets = [392, 0], sizes = [392, 128], strides = [1, 1]} : vector<1568x128xf32> to vector<392x128xf32>
    %5 = arith.maximumf %3, %4 : vector<392x128xf32>
    %6 = vector.extract_strided_slice %2 {offsets = [784, 0], sizes = [392, 128], strides = [1, 1]} : vector<1568x128xf32> to vector<392x128xf32>
    %7 = vector.extract_strided_slice %2 {offsets = [1176, 0], sizes = [392, 128], strides = [1, 1]} : vector<1568x128xf32> to vector<392x128xf32>
    %8 = arith.maximumf %6, %7 : vector<392x128xf32>
    %9 = arith.maximumf %5, %8 : vector<392x128xf32>
    %c0_3 = arith.constant 0 : index
    %c0_4 = arith.constant 0 : index
    %10 = vector.load %arg3[%c0_3, %c0_4] : memref<1x128xf32, #tpu.memory_space<vmem>>, vector<1x128xf32>
    %11 = vector.broadcast %10 : vector<1x128xf32> to vector<392x128xf32>
    %12 = arith.addf %9, %11 : vector<392x128xf32>
    %cst_5 = arith.constant 0.000000e+00 : f32
    %13 = vector.broadcast %cst_5 : f32 to vector<392x128xf32>
    %14 = arith.maximumf %12, %13 : vector<392x128xf32>
    %15 = arith.truncf %14 : vector<392x128xf32> to vector<392x128xbf16>
    %c0_6 = arith.constant 0 : index
    %c0_7 = arith.constant 0 : index
    %16 = vector.load %arg4[%c0_6, %c0_7] : memref<392x128xbf16, #tpu.memory_space<vmem>>, vector<392x128xbf16>
    tpu.vector_store %arg4[%c0_6, %c0_7], %15 {strides = array<i32>} : memref<392x128xbf16, #tpu.memory_space<vmem>>, vector<392x128xbf16>,
    return
  }
  func.func @transform_0(%arg0: i32) -> (i32, i32) {
    %c0_i32 = arith.constant 0 : i32
    %c0_i32_0 = arith.constant 0 : i32
    %c0_i32_1 = arith.constant 0 : i32
    return %c0_i32, %c0_i32_0 : i32, i32
  }
  func.func @transform_1(%arg0: i32) -> (i32, i32) {
    %c0_i32 = arith.constant 0 : i32
    %c0_i32_0 = arith.constant 0 : i32
    %c0_i32_1 = arith.constant 0 : i32
    return %c0_i32, %c0_i32_0 : i32, i32
  }
  func.func @transform_2(%arg0: i32) -> (i32, i32) {
    %c0_i32 = arith.constant 0 : i32
    %c0_i32_0 = arith.constant 0 : i32
    %c0_i32_1 = arith.constant 0 : i32
    return %c0_i32, %c0_i32_0 : i32, i32
  }
  func.func @transform_3(%arg0: i32) -> (i32, i32) {
    %c0_i32 = arith.constant 0 : i32
    %c0_i32_0 = arith.constant 0 : i32
    %c0_i32_1 = arith.constant 0 : i32
    return %c0_i32, %c0_i32_0 : i32, i32
  }
}

module attributes {stable_mosaic.version = 11 : i64} {
  func.func @_conv_relu_pool_kernel(%arg0: i32, %arg1: memref<224x256xbf16, #tpu.memory_space<vmem>>, %arg2: memref<256x128xbf16, #tpu.memory_space<vmem>>, %arg3: memref<1x128xf32, #tpu.memory_space<vmem>>, %arg4: memref<56x128xbf16, #tpu.memory_space<vmem>>) attributes {dimension_semantics = [#tpu.dimension_semantics<arbitrary>], iteration_bounds = array<i64: 1>, scalar_prefetch = 0 : i64, scratch_operands = 0 : i64, tpu.core_type = #tpu.core_type<tc>, window_params = [{pipeline_mode = #tpu.pipeline_mode<synchronous>, transform_indices = @transform_0, window_bounds = array<i64: 224, 256>}, {pipeline_mode = #tpu.pipeline_mode<synchronous>, transform_indices = @transform_1, window_bounds = array<i64: 256, 128>}, {pipeline_mode = #tpu.pipeline_mode<synchronous>, transform_indices = @transform_2, window_bounds = array<i64: 1, 128>}, {pipeline_mode = #tpu.pipeline_mode<synchronous>, transform_indices = @transform_3, window_bounds = array<i64: 56, 128>}]} {
    %c0 = arith.constant 0 : index
    %c0_0 = arith.constant 0 : index
    %0 = vector.load %arg1[%c0, %c0_0] : memref<224x256xbf16, #tpu.memory_space<vmem>>, vector<224x256xbf16>
    %c0_1 = arith.constant 0 : index
    %c0_2 = arith.constant 0 : index
    %1 = vector.load %arg2[%c0_1, %c0_2] : memref<256x128xbf16, #tpu.memory_space<vmem>>, vector<256x128xbf16>
    %cst = arith.constant dense<0.000000e+00> : vector<224x128xf32>
    %2 = tpu.matmul %0, %1, %cst {dimension_numbers = #tpu.dot_dimension_numbers<[1], [0], [0], [1], [0, 0, 1, 1], [], []>} : vector<224x256xbf16>, vector<256x128xbf16>, vector<224x128xf32> -> vector<224x128xf32>
    %3 = vector.extract_strided_slice %2 {offsets = [0, 0], sizes = [56, 128], strides = [1, 1]} : vector<224x128xf32> to vector<56x128xf32>
    %4 = vector.extract_strided_slice %2 {offsets = [56, 0], sizes = [56, 128], strides = [1, 1]} : vector<224x128xf32> to vector<56x128xf32>
    %5 = arith.maximumf %3, %4 : vector<56x128xf32>
    %6 = vector.extract_strided_slice %2 {offsets = [112, 0], sizes = [56, 128], strides = [1, 1]} : vector<224x128xf32> to vector<56x128xf32>
    %7 = vector.extract_strided_slice %2 {offsets = [168, 0], sizes = [56, 128], strides = [1, 1]} : vector<224x128xf32> to vector<56x128xf32>
    %8 = arith.maximumf %6, %7 : vector<56x128xf32>
    %9 = arith.maximumf %5, %8 : vector<56x128xf32>
    %c0_3 = arith.constant 0 : index
    %c0_4 = arith.constant 0 : index
    %10 = vector.load %arg3[%c0_3, %c0_4] : memref<1x128xf32, #tpu.memory_space<vmem>>, vector<1x128xf32>
    %11 = vector.broadcast %10 : vector<1x128xf32> to vector<56x128xf32>
    %12 = arith.addf %9, %11 : vector<56x128xf32>
    %cst_5 = arith.constant 0.000000e+00 : f32
    %13 = vector.broadcast %cst_5 : f32 to vector<56x128xf32>
    %14 = arith.maximumf %12, %13 : vector<56x128xf32>
    %15 = arith.truncf %14 : vector<56x128xf32> to vector<56x128xbf16>
    %c0_6 = arith.constant 0 : index
    %c0_7 = arith.constant 0 : index
    %16 = vector.load %arg4[%c0_6, %c0_7] : memref<56x128xbf16, #tpu.memory_space<vmem>>, vector<56x128xbf16>
    tpu.vector_store %arg4[%c0_6, %c0_7], %15 {strides = array<i32>} : memref<56x128xbf16, #tpu.memory_space<vmem>>, vector<56x128xbf16>,
    return
  }
  func.func @transform_0(%arg0: i32) -> (i32, i32) {
    %c0_i32 = arith.constant 0 : i32
    %c0_i32_0 = arith.constant 0 : i32
    %c0_i32_1 = arith.constant 0 : i32
    return %c0_i32, %c0_i32_0 : i32, i32
  }
  func.func @transform_1(%arg0: i32) -> (i32, i32) {
    %c0_i32 = arith.constant 0 : i32
    %c0_i32_0 = arith.constant 0 : i32
    %c0_i32_1 = arith.constant 0 : i32
    return %c0_i32, %c0_i32_0 : i32, i32
  }
  func.func @transform_2(%arg0: i32) -> (i32, i32) {
    %c0_i32 = arith.constant 0 : i32
    %c0_i32_0 = arith.constant 0 : i32
    %c0_i32_1 = arith.constant 0 : i32
    return %c0_i32, %c0_i32_0 : i32, i32
  }
  func.func @transform_3(%arg0: i32) -> (i32, i32) {
    %c0_i32 = arith.constant 0 : i32
    %c0_i32_0 = arith.constant 0 : i32
    %c0_i32_1 = arith.constant 0 : i32
    return %c0_i32, %c0_i32_0 : i32, i32
  }
}

module attributes {stable_mosaic.version = 11 : i64} {
  func.func @_fc_stack_kernel(%arg0: i32, %arg1: memref<8x512xbf16, #tpu.memory_space<vmem>>, %arg2: memref<512x256xbf16, #tpu.memory_space<vmem>>, %arg3: memref<1x256xf32, #tpu.memory_space<vmem>>, %arg4: memref<256x128xbf16, #tpu.memory_space<vmem>>, %arg5: memref<1x128xf32, #tpu.memory_space<vmem>>, %arg6: memref<128x128xbf16, #tpu.memory_space<vmem>>, %arg7: memref<1x128xf32, #tpu.memory_space<vmem>>, %arg8: memref<8x128xf32, #tpu.memory_space<vmem>>) attributes {dimension_semantics = [#tpu.dimension_semantics<arbitrary>], iteration_bounds = array<i64: 1>, scalar_prefetch = 0 : i64, scratch_operands = 0 : i64, tpu.core_type = #tpu.core_type<tc>, window_params = [{pipeline_mode = #tpu.pipeline_mode<synchronous>, transform_indices = @transform_0, window_bounds = array<i64: 8, 512>}, {pipeline_mode = #tpu.pipeline_mode<synchronous>, transform_indices = @transform_1, window_bounds = array<i64: 512, 256>}, {pipeline_mode = #tpu.pipeline_mode<synchronous>, transform_indices = @transform_2, window_bounds = array<i64: 1, 256>}, {pipeline_mode = #tpu.pipeline_mode<synchronous>, transform_indices = @transform_3, window_bounds = array<i64: 256, 128>}, {pipeline_mode = #tpu.pipeline_mode<synchronous>, transform_indices = @transform_4, window_bounds = array<i64: 1, 128>}, {pipeline_mode = #tpu.pipeline_mode<synchronous>, transform_indices = @transform_5, window_bounds = array<i64: 128, 128>}, {pipeline_mode = #tpu.pipeline_mode<synchronous>, transform_indices = @transform_6, window_bounds = array<i64: 1, 128>}, {pipeline_mode = #tpu.pipeline_mode<synchronous>, transform_indices = @transform_7, window_bounds = array<i64: 8, 128>}]} {
    %c0 = arith.constant 0 : index
    %c0_0 = arith.constant 0 : index
    %0 = vector.load %arg1[%c0, %c0_0] : memref<8x512xbf16, #tpu.memory_space<vmem>>, vector<8x512xbf16>
    %c0_1 = arith.constant 0 : index
    %c0_2 = arith.constant 0 : index
    %1 = vector.load %arg2[%c0_1, %c0_2] : memref<512x256xbf16, #tpu.memory_space<vmem>>, vector<512x256xbf16>
    %cst = arith.constant dense<0.000000e+00> : vector<8x256xf32>
    %2 = tpu.matmul %0, %1, %cst {dimension_numbers = #tpu.dot_dimension_numbers<[1], [0], [0], [1], [0, 0, 1, 1], [], []>} : vector<8x512xbf16>, vector<512x256xbf16>, vector<8x256xf32> -> vector<8x256xf32>
    %c0_3 = arith.constant 0 : index
    %c0_4 = arith.constant 0 : index
    %3 = vector.load %arg3[%c0_3, %c0_4] : memref<1x256xf32, #tpu.memory_space<vmem>>, vector<1x256xf32>
    %4 = vector.broadcast %3 : vector<1x256xf32> to vector<8x256xf32>
    %5 = arith.addf %2, %4 : vector<8x256xf32>
    %cst_5 = arith.constant 0.000000e+00 : f32
    %6 = vector.broadcast %cst_5 : f32 to vector<8x256xf32>
    %7 = arith.maximumf %5, %6 : vector<8x256xf32>
    %8 = arith.truncf %7 : vector<8x256xf32> to vector<8x256xbf16>
    %c0_6 = arith.constant 0 : index
    %c0_7 = arith.constant 0 : index
    %9 = vector.load %arg4[%c0_6, %c0_7] : memref<256x128xbf16, #tpu.memory_space<vmem>>, vector<256x128xbf16>
    %cst_8 = arith.constant dense<0.000000e+00> : vector<8x128xf32>
    %10 = tpu.matmul %8, %9, %cst_8 {dimension_numbers = #tpu.dot_dimension_numbers<[1], [0], [0], [1], [0, 0, 1, 1], [], []>} : vector<8x256xbf16>, vector<256x128xbf16>, vector<8x128xf32> -> vector<8x128xf32>
    %c0_9 = arith.constant 0 : index
    %c0_10 = arith.constant 0 : index
    %11 = vector.load %arg5[%c0_9, %c0_10] : memref<1x128xf32, #tpu.memory_space<vmem>>, vector<1x128xf32>
    %12 = vector.broadcast %11 : vector<1x128xf32> to vector<8x128xf32>
    %13 = arith.addf %10, %12 : vector<8x128xf32>
    %cst_11 = arith.constant 0.000000e+00 : f32
    %14 = vector.broadcast %cst_11 : f32 to vector<8x128xf32>
    %15 = arith.maximumf %13, %14 : vector<8x128xf32>
    %16 = arith.truncf %15 : vector<8x128xf32> to vector<8x128xbf16>
    %c0_12 = arith.constant 0 : index
    %c0_13 = arith.constant 0 : index
    %17 = vector.load %arg6[%c0_12, %c0_13] : memref<128x128xbf16, #tpu.memory_space<vmem>>, vector<128x128xbf16>
    %cst_14 = arith.constant dense<0.000000e+00> : vector<8x128xf32>
    %18 = tpu.matmul %16, %17, %cst_14 {dimension_numbers = #tpu.dot_dimension_numbers<[1], [0], [0], [1], [0, 0, 1, 1], [], []>} : vector<8x128xbf16>, vector<128x128xbf16>, vector<8x128xf32> -> vector<8x128xf32>
    %c0_15 = arith.constant 0 : index
    %c0_16 = arith.constant 0 : index
    %19 = vector.load %arg7[%c0_15, %c0_16] : memref<1x128xf32, #tpu.memory_space<vmem>>, vector<1x128xf32>
    %20 = vector.broadcast %19 : vector<1x128xf32> to vector<8x128xf32>
    %21 = arith.addf %18, %20 : vector<8x128xf32>
    %c0_17 = arith.constant 0 : index
    %c0_18 = arith.constant 0 : index
    %22 = vector.load %arg8[%c0_17, %c0_18] : memref<8x128xf32, #tpu.memory_space<vmem>>, vector<8x128xf32>
    tpu.vector_store %arg8[%c0_17, %c0_18], %21 {strides = array<i32>} : memref<8x128xf32, #tpu.memory_space<vmem>>, vector<8x128xf32>,
    return
  }
  func.func @transform_0(%arg0: i32) -> (i32, i32) {
    %c0_i32 = arith.constant 0 : i32
    %c0_i32_0 = arith.constant 0 : i32
    %c0_i32_1 = arith.constant 0 : i32
    return %c0_i32, %c0_i32_0 : i32, i32
  }
  func.func @transform_1(%arg0: i32) -> (i32, i32) {
    %c0_i32 = arith.constant 0 : i32
    %c0_i32_0 = arith.constant 0 : i32
    %c0_i32_1 = arith.constant 0 : i32
    return %c0_i32, %c0_i32_0 : i32, i32
  }
  func.func @transform_2(%arg0: i32) -> (i32, i32) {
    %c0_i32 = arith.constant 0 : i32
    %c0_i32_0 = arith.constant 0 : i32
    %c0_i32_1 = arith.constant 0 : i32
    return %c0_i32, %c0_i32_0 : i32, i32
  }
  func.func @transform_3(%arg0: i32) -> (i32, i32) {
    %c0_i32 = arith.constant 0 : i32
    %c0_i32_0 = arith.constant 0 : i32
    %c0_i32_1 = arith.constant 0 : i32
    return %c0_i32, %c0_i32_0 : i32, i32
  }
  func.func @transform_4(%arg0: i32) -> (i32, i32) {
    %c0_i32 = arith.constant 0 : i32
    %c0_i32_0 = arith.constant 0 : i32
    %c0_i32_1 = arith.constant 0 : i32
    return %c0_i32, %c0_i32_0 : i32, i32
  }
  func.func @transform_5(%arg0: i32) -> (i32, i32) {
    %c0_i32 = arith.constant 0 : i32
    %c0_i32_0 = arith.constant 0 : i32
    %c0_i32_1 = arith.constant 0 : i32
    return %c0_i32, %c0_i32_0 : i32, i32
  }
  func.func @transform_6(%arg0: i32) -> (i32, i32) {
    %c0_i32 = arith.constant 0 : i32
    %c0_i32_0 = arith.constant 0 : i32
    %c0_i32_1 = arith.constant 0 : i32
    return %c0_i32, %c0_i32_0 : i32, i32
  }
  func.func @transform_7(%arg0: i32) -> (i32, i32) {
    %c0_i32 = arith.constant 0 : i32
    %c0_i32_0 = arith.constant 0 : i32
    %c0_i32_1 = arith.constant 0 : i32
    return %c0_i32, %c0_i32_0 : i32, i32
  }
}

</mosaic_0001>

<llo_original>
// kernel: lenet_forward.3
$region0: #{lenet_forward.3}
  #allocation0 [shape = 'u32[]', space=smem, size = 0x4, offset = 0x4, fixed_abs, tag = 'smem constant byte address 0x4 - core index']
  #allocation1 [shape = 'u32[72,128]{1,0:T(1,128)}', space=vmem, size = 0x9000, scoped, tag = 'internal scratch']
  %s0 = inlined_call_operand.vmem [shape: bf16[1568,128], index: 0, kind: input, shape index: {}]
  %s1 = inlined_call_operand.vmem [shape: bf16[128,128], index: 1, kind: input, shape index: {}]
  %s2 = inlined_call_operand.vmem [shape: f32[1,128], index: 2, kind: input, shape index: {}]
  %s3 = inlined_call_operand.vmem [shape: bf16[392,128], index: 3, kind: output, shape index: {}]
  %s4 = sld [smem:[#allocation0]]
  $region22: #{lenet_forward.3} parent=0
    _
  %s6 = ssub.s32 1, %s4
  %s7 = scalar_select 0, %s6, %s4
  // Predicated region
  $region2: #{lenet_forward.3} parent=0 // pred_check
    _
  $region3: #{lenet_forward.3} parent=0 // pred_check_branch
    %9 = sbr.rel (0) target = $region5
  $region4: #{lenet_forward.3} parent=0 // pred_region
    _
  $region5: #{lenet_forward.3} parent=0 // pred_fallthru
    _
  // Predicated region
  $region6: #{lenet_forward.3} parent=0 // pred_check
    _
  $region7: #{lenet_forward.3} parent=0 // pred_check_branch
    %11 = sbr.rel (0) target = $region9
  $region8: #{lenet_forward.3} parent=0 // pred_region
    _
  $region9: #{lenet_forward.3} parent=0 // pred_fallthru
    _
  // Predicated region
  $region10: #{lenet_forward.3} parent=0 // pred_check
    _
  $region11: #{lenet_forward.3} parent=0 // pred_check_branch
    %13 = sbr.rel (0) target = $region13
  $region12: #{lenet_forward.3} parent=0 // pred_region
    _
  $region13: #{lenet_forward.3} parent=0 // pred_fallthru
    _
  %v14 = vld [vmem:[%s0] sm:$0xf]
  %v15 = vld [vmem:[%s0 + $0x4] sm:$0xf]
  %v16 = vld [vmem:[%s0 + $0x8] sm:$0xf]
  %v17 = vld [vmem:[%s0 + $0xc] sm:$0xf]
  %v18 = vld [vmem:[%s0 + $0x10] sm:$0xf]
  %v19 = vld [vmem:[%s0 + $0x14] sm:$0xf]
  %v20 = vld [vmem:[%s0 + $0x18] sm:$0xf]
  %v21 = vld [vmem:[%s0 + $0x1c] sm:$0xf]
  %v22 = vld [vmem:[%s0 + $0x20] sm:$0xf]
  %v23 = vld [vmem:[%s0 + $0x24] sm:$0xf]
  %v24 = vld [vmem:[%s0 + $0x28] sm:$0xf]
  %v25 = vld [vmem:[%s0 + $0x2c] sm:$0xf]
  %v26 = vld [vmem:[%s0 + $0x30] sm:$0xf]
  %v27 = vld [vmem:[%s0 + $0x34] sm:$0xf]
  %v28 = vld [vmem:[%s0 + $0x38] sm:$0xf]
  %v29 = vld [vmem:[%s0 + $0x3c] sm:$0xf]
  %v30 = vld [vmem:[%s0 + $0x40] sm:$0xf]
  %v31 = vld [vmem:[%s0 + $0x44] sm:$0xf]
  %v32 = vld [vmem:[%s0 + $0x48] sm:$0xf]
  %v33 = vld [vmem:[%s0 + $0x4c] sm:$0xf]
  %v34 = vld [vmem:[%s0 + $0x50] sm:$0xf]
  %v35 = vld [vmem:[%s0 + $0x54] sm:$0xf]
  %v36 = vld [vmem:[%s0 + $0x58] sm:$0xf]
  %v37 = vld [vmem:[%s0 + $0x5c] sm:$0xf]
  %v38 = vld [vmem:[%s0 + $0x60] sm:$0xf]
  %v39 = vld [vmem:[%s0 + $0x64] sm:$0xf]
  %v40 = vld [vmem:[%s0 + $0x68] sm:$0xf]
  %v41 = vld [vmem:[%s0 + $0x6c] sm:$0xf]
  %v42 = vld [vmem:[%s0 + $0x70] sm:$0xf]
  %v43 = vld [vmem:[%s0 + $0x74] sm:$0xf]
  %v44 = vld [vmem:[%s0 + $0x78] sm:$0xf]
  %v45 = vld [vmem:[%s0 + $0x7c] sm:$0xf]
  %v46 = vld [vmem:[%s0 + $0x80] sm:$0xf]
  %v47 = vld [vmem:[%s0 + $0x84] sm:$0xf]
  %v48 = vld [vmem:[%s0 + $0x88] sm:$0xf]
  %v49 = vld [vmem:[%s0 + $0x8c] sm:$0xf]
  %v50 = vld [vmem:[%s0 + $0x90] sm:$0xf]
  %v51 = vld [vmem:[%s0 + $0x94] sm:$0xf]
  %v52 = vld [vmem:[%s0 + $0x98] sm:$0xf]
  %v53 = vld [vmem:[%s0 + $0x9c] sm:$0xf]
  %v54 = vld [vmem:[%s0 + $0xa0] sm:$0xf]
  %v55 = vld [vmem:[%s0 + $0xa4] sm:$0xf]
  %v56 = vld [vmem:[%s0 + $0xa8] sm:$0xf]
  %v57 = vld [vmem:[%s0 + $0xac] sm:$0xf]
  %v58 = vld [vmem:[%s0 + $0xb0] sm:$0xf]
  %v59 = vld [vmem:[%s0 + $0xb4] sm:$0xf]
  %v60 = vld [vmem:[%s0 + $0xb8] sm:$0xf]
  %v61 = vld [vmem:[%s0 + $0xbc] sm:$0xf]
  %v62 = vld [vmem:[%s0 + $0xc0] sm:$0xf]
  %v63 = vld [vmem:[%s0 + $0xc4] sm:$0xf]
  %v64 = vld [vmem:[%s0 + $0xc8] sm:$0xf]
  %v65 = vld [vmem:[%s0 + $0xcc] sm:$0xf]
  %v66 = vld [vmem:[%s0 + $0xd0] sm:$0xf]
  %v67 = vld [vmem:[%s0 + $0xd4] sm:$0xf]
  %v68 = vld [vmem:[%s0 + $0xd8] sm:$0xf]
  %v69 = vld [vmem:[%s0 + $0xdc] sm:$0xf]
  %v70 = vld [vmem:[%s0 + $0xe0] sm:$0xf]
  %v71 = vld [vmem:[%s0 + $0xe4] sm:$0xf]
  %v72 = vld [vmem:[%s0 + $0xe8] sm:$0xf]
  %v73 = vld [vmem:[%s0 + $0xec] sm:$0xf]
  %v74 = vld [vmem:[%s0 + $0xf0] sm:$0xf]
  %v75 = vld [vmem:[%s0 + $0xf4] sm:$0xf]
  %v76 = vld [vmem:[%s0 + $0xf8] sm:$0xf]
  %v77 = vld [vmem:[%s0 + $0xfc] sm:$0xf]
  %v78 = vld [vmem:[%s0 + $0x100] sm:$0xf]
  %v79 = vld [vmem:[%s0 + $0x104] sm:$0xf]
  %v80 = vld [vmem:[%s0 + $0x108] sm:$0xf]
  %v81 = vld [vmem:[%s0 + $0x10c] sm:$0xf]
  %v82 = vld [vmem:[%s0 + $0x110] sm:$0xf]
  %v83 = vld [vmem:[%s0 + $0x114] sm:$0xf]
  %v84 = vld [vmem:[%s0 + $0x118] sm:$0xf]
  %v85 = vld [vmem:[%s0 + $0x11c] sm:$0xf]
  %v86 = vld [vmem:[%s0 + $0x120] sm:$0xf]
  %v87 = vld [vmem:[%s0 + $0x124] sm:$0xf]
  %v88 = vld [vmem:[%s0 + $0x128] sm:$0xf]
  %v89 = vld [vmem:[%s0 + $0x12c] sm:$0xf]
  %v90 = vld [vmem:[%s0 + $0x130] sm:$0xf]
  %v91 = vld [vmem:[%s0 + $0x134] sm:$0xf]
  %v92 = vld [vmem:[%s0 + $0x138] sm:$0xf]
  %v93 = vld [vmem:[%s0 + $0x13c] sm:$0xf]
  %v94 = vld [vmem:[%s0 + $0x140] sm:$0xf]
  %v95 = vld [vmem:[%s0 + $0x144] sm:$0xf]
  %v96 = vld [vmem:[%s0 + $0x148] sm:$0xf]
  %v97 = vld [vmem:[%s0 + $0x14c] sm:$0xf]
  %v98 = vld [vmem:[%s0 + $0x150] sm:$0xf]
  %v99 = vld [vmem:[%s0 + $0x154] sm:$0xf]
  %v100 = vld [vmem:[%s0 + $0x158] sm:$0xf]
  %v101 = vld [vmem:[%s0 + $0x15c] sm:$0xf]
  %v102 = vld [vmem:[%s0 + $0x160] sm:$0xf]
  %v103 = vld [vmem:[%s0 + $0x164] sm:$0xf]
  %v104 = vld [vmem:[%s0 + $0x168] sm:$0xf]
  %v105 = vld [vmem:[%s0 + $0x16c] sm:$0xf]
  %v106 = vld [vmem:[%s0 + $0x170] sm:$0xf]
  %v107 = vld [vmem:[%s0 + $0x174] sm:$0xf]
  %v108 = vld [vmem:[%s0 + $0x178] sm:$0xf]
  %v109 = vld [vmem:[%s0 + $0x17c] sm:$0xf]
  %v110 = vld [vmem:[%s0 + $0x180] sm:$0xf]
  %v111 = vld [vmem:[%s0 + $0x184] sm:$0xf]
  %v112 = vld [vmem:[%s0 + $0x188] sm:$0xf]
  %v113 = vld [vmem:[%s0 + $0x18c] sm:$0xf]
  %v114 = vld [vmem:[%s0 + $0x190] sm:$0xf]
  %v115 = vld [vmem:[%s0 + $0x194] sm:$0xf]
  %v116 = vld [vmem:[%s0 + $0x198] sm:$0xf]
  %v117 = vld [vmem:[%s0 + $0x19c] sm:$0xf]
  %v118 = vld [vmem:[%s0 + $0x1a0] sm:$0xf]
  %v119 = vld [vmem:[%s0 + $0x1a4] sm:$0xf]
  %v120 = vld [vmem:[%s0 + $0x1a8] sm:$0xf]
  %v121 = vld [vmem:[%s0 + $0x1ac] sm:$0xf]
  %v122 = vld [vmem:[%s0 + $0x1b0] sm:$0xf]
  %v123 = vld [vmem:[%s0 + $0x1b4] sm:$0xf]
  %v124 = vld [vmem:[%s0 + $0x1b8] sm:$0xf]
  %v125 = vld [vmem:[%s0 + $0x1bc] sm:$0xf]
  %v126 = vld [vmem:[%s0 + $0x1c0] sm:$0xf]
  %v127 = vld [vmem:[%s0 + $0x1c4] sm:$0xf]
  %v128 = vld [vmem:[%s0 + $0x1c8] sm:$0xf]
  %v129 = vld [vmem:[%s0 + $0x1cc] sm:$0xf]
  %v130 = vld [vmem:[%s0 + $0x1d0] sm:$0xf]
  %v131 = vld [vmem:[%s0 + $0x1d4] sm:$0xf]
  %v132 = vld [vmem:[%s0 + $0x1d8] sm:$0xf]
  %v133 = vld [vmem:[%s0 + $0x1dc] sm:$0xf]
  %v134 = vld [vmem:[%s0 + $0x1e0] sm:$0xf]
  %v135 = vld [vmem:[%s0 + $0x1e4] sm:$0xf]
  %v136 = vld [vmem:[%s0 + $0x1e8] sm:$0xf]
  %v137 = vld [vmem:[%s0 + $0x1ec] sm:$0xf]
  %v138 = vld [vmem:[%s0 + $0x1f0] sm:$0xf]
  %v139 = vld [vmem:[%s0 + $0x1f4] sm:$0xf]
  %v140 = vld [vmem:[%s0 + $0x1f8] sm:$0xf]
  %v141 = vld [vmem:[%s0 + $0x1fc] sm:$0xf]
  %v142 = vld [vmem:[%s0 + $0x200] sm:$0xf]
  %v143 = vld [vmem:[%s0 + $0x204] sm:$0xf]
  %v144 = vld [vmem:[%s0 + $0x208] sm:$0xf]
  %v145 = vld [vmem:[%s0 + $0x20c] sm:$0xf]
  %v146 = vld [vmem:[%s0 + $0x210] sm:$0xf]
  %v147 = vld [vmem:[%s0 + $0x214] sm:$0xf]
  %v148 = vld [vmem:[%s0 + $0x218] sm:$0xf]
  %v149 = vld [vmem:[%s0 + $0x21c] sm:$0xf]
  %v150 = vld [vmem:[%s0 + $0x220] sm:$0xf]
  %v151 = vld [vmem:[%s0 + $0x224] sm:$0xf]
  %v152 = vld [vmem:[%s0 + $0x228] sm:$0xf]
  %v153 = vld [vmem:[%s0 + $0x22c] sm:$0xf]
  %v154 = vld [vmem:[%s0 + $0x230] sm:$0xf]
  %v155 = vld [vmem:[%s0 + $0x234] sm:$0xf]
  %v156 = vld [vmem:[%s0 + $0x238] sm:$0xf]
  %v157 = vld [vmem:[%s0 + $0x23c] sm:$0xf]
  %v158 = vld [vmem:[%s0 + $0x240] sm:$0xf]
  %v159 = vld [vmem:[%s0 + $0x244] sm:$0xf]
  %v160 = vld [vmem:[%s0 + $0x248] sm:$0xf]
  %v161 = vld [vmem:[%s0 + $0x24c] sm:$0xf]
  %v162 = vld [vmem:[%s0 + $0x250] sm:$0xf]
  %v163 = vld [vmem:[%s0 + $0x254] sm:$0xf]
  %v164 = vld [vmem:[%s0 + $0x258] sm:$0xf]
  %v165 = vld [vmem:[%s0 + $0x25c] sm:$0xf]
  %v166 = vld [vmem:[%s0 + $0x260] sm:$0xf]
  %v167 = vld [vmem:[%s0 + $0x264] sm:$0xf]
  %v168 = vld [vmem:[%s0 + $0x268] sm:$0xf]
  %v169 = vld [vmem:[%s0 + $0x26c] sm:$0xf]
  %v170 = vld [vmem:[%s0 + $0x270] sm:$0xf]
  %v171 = vld [vmem:[%s0 + $0x274] sm:$0xf]
  %v172 = vld [vmem:[%s0 + $0x278] sm:$0xf]
  %v173 = vld [vmem:[%s0 + $0x27c] sm:$0xf]
  %v174 = vld [vmem:[%s0 + $0x280] sm:$0xf]
  %v175 = vld [vmem:[%s0 + $0x284] sm:$0xf]
  %v176 = vld [vmem:[%s0 + $0x288] sm:$0xf]
  %v177 = vld [vmem:[%s0 + $0x28c] sm:$0xf]
  %v178 = vld [vmem:[%s0 + $0x290] sm:$0xf]
  %v179 = vld [vmem:[%s0 + $0x294] sm:$0xf]
  %v180 = vld [vmem:[%s0 + $0x298] sm:$0xf]
  %v181 = vld [vmem:[%s0 + $0x29c] sm:$0xf]
  %v182 = vld [vmem:[%s0 + $0x2a0] sm:$0xf]
  %v183 = vld [vmem:[%s0 + $0x2a4] sm:$0xf]
  %v184 = vld [vmem:[%s0 + $0x2a8] sm:$0xf]
  %v185 = vld [vmem:[%s0 + $0x2ac] sm:$0xf]
  %v186 = vld [vmem:[%s0 + $0x2b0] sm:$0xf]
  %v187 = vld [vmem:[%s0 + $0x2b4] sm:$0xf]
  %v188 = vld [vmem:[%s0 + $0x2b8] sm:$0xf]
  %v189 = vld [vmem:[%s0 + $0x2bc] sm:$0xf]
  %v190 = vld [vmem:[%s0 + $0x2c0] sm:$0xf]
  %v191 = vld [vmem:[%s0 + $0x2c4] sm:$0xf]
  %v192 = vld [vmem:[%s0 + $0x2c8] sm:$0xf]
  %v193 = vld [vmem:[%s0 + $0x2cc] sm:$0xf]
  %v194 = vld [vmem:[%s0 + $0x2d0] sm:$0xf]
  %v195 = vld [vmem:[%s0 + $0x2d4] sm:$0xf]
  %v196 = vld [vmem:[%s0 + $0x2d8] sm:$0xf]
  %v197 = vld [vmem:[%s0 + $0x2dc] sm:$0xf]
  %v198 = vld [vmem:[%s0 + $0x2e0] sm:$0xf]
  %v199 = vld [vmem:[%s0 + $0x2e4] sm:$0xf]
  %v200 = vld [vmem:[%s0 + $0x2e8] sm:$0xf]
  %v201 = vld [vmem:[%s0 + $0x2ec] sm:$0xf]
  %v202 = vld [vmem:[%s0 + $0x2f0] sm:$0xf]
  %v203 = vld [vmem:[%s0 + $0x2f4] sm:$0xf]
  %v204 = vld [vmem:[%s0 + $0x2f8] sm:$0xf]
  %v205 = vld [vmem:[%s0 + $0x2fc] sm:$0xf]
  %v206 = vld [vmem:[%s0 + $0x300] sm:$0xf]
  %v207 = vld [vmem:[%s0 + $0x304] sm:$0xf]
  %v208 = vld [vmem:[%s0 + $0x308] sm:$0xf]
  %v209 = vld [vmem:[%s0 + $0x30c] sm:$0xf]
  %v210 = vld [vmem:[%s1] sm:$0xf]
  %v211 = vld [vmem:[%s1 + $0x4] sm:$0xf]
  %v212 = vld [vmem:[%s1 + $0x8] sm:$0xf]
  %v213 = vld [vmem:[%s1 + $0xc] sm:$0xf]
  %v214 = vld [vmem:[%s1 + $0x10] sm:$0xf]
  %v215 = vld [vmem:[%s1 + $0x14] sm:$0xf]
  %v216 = vld [vmem:[%s1 + $0x18] sm:$0xf]
  %v217 = vld [vmem:[%s1 + $0x1c] sm:$0xf]
  %v218 = vld [vmem:[%s1 + $0x20] sm:$0xf]
  %v219 = vld [vmem:[%s1 + $0x24] sm:$0xf]
  %v220 = vld [vmem:[%s1 + $0x28] sm:$0xf]
  %v221 = vld [vmem:[%s1 + $0x2c] sm:$0xf]
  %v222 = vld [vmem:[%s1 + $0x30] sm:$0xf]
  %v223 = vld [vmem:[%s1 + $0x34] sm:$0xf]
  %v224 = vld [vmem:[%s1 + $0x38] sm:$0xf]
  %v225 = vld [vmem:[%s1 + $0x3c] sm:$0xf]
  %v422 = vunpack.c.l.b16 %v14
  %v423 = vunpack.c.l.b16 %v15
  %v424 = vunpack.c.l.b16 %v16
  %v425 = vunpack.c.l.b16 %v17
  %v426 = vunpack.c.l.b16 %v18
  %v427 = vunpack.c.l.b16 %v19
  %v428 = vunpack.c.l.b16 %v20
  %v429 = vunpack.c.l.b16 %v21
  %v430 = vunpack.c.l.b16 %v22
  %v431 = vunpack.c.l.b16 %v23
  %v432 = vunpack.c.l.b16 %v24
  %v433 = vunpack.c.l.b16 %v25
  %v434 = vunpack.c.l.b16 %v26
  %v435 = vunpack.c.l.b16 %v27
  %v436 = vunpack.c.l.b16 %v28
  %v437 = vunpack.c.l.b16 %v29
  %v438 = vunpack.c.l.b16 %v30
  %v439 = vunpack.c.l.b16 %v31
  %v440 = vunpack.c.l.b16 %v32
  %v441 = vunpack.c.l.b16 %v33
  %v442 = vunpack.c.l.b16 %v34
  %v443 = vunpack.c.l.b16 %v35
  %v444 = vunpack.c.l.b16 %v36
  %v445 = vunpack.c.l.b16 %v37
  %v446 = vunpack.c.l.b16 %v38
  %v447 = vunpack.c.l.b16 %v39
  %v448 = vunpack.c.l.b16 %v40
  %v449 = vunpack.c.l.b16 %v41
  %v450 = vunpack.c.l.b16 %v42
  %v451 = vunpack.c.l.b16 %v43
  %v452 = vunpack.c.l.b16 %v44
  %v453 = vunpack.c.l.b16 %v45
  %v454 = vunpack.c.l.b16 %v46
  %v455 = vunpack.c.l.b16 %v47
  %v456 = vunpack.c.l.b16 %v48
  %v457 = vunpack.c.l.b16 %v49
  %v458 = vunpack.c.l.b16 %v50
  %v459 = vunpack.c.l.b16 %v51
  %v460 = vunpack.c.l.b16 %v52
  %v461 = vunpack.c.l.b16 %v53
  %v462 = vunpack.c.l.b16 %v54
  %v463 = vunpack.c.l.b16 %v55
  %v464 = vunpack.c.l.b16 %v56
  %v465 = vunpack.c.l.b16 %v57
  %v466 = vunpack.c.l.b16 %v58
  %v467 = vunpack.c.l.b16 %v59
  %v468 = vunpack.c.l.b16 %v60
  %v469 = vunpack.c.l.b16 %v61
  %v470 = vunpack.c.l.b16 %v62
  %v471 = vunpack.c.l.b16 %v63
  %v472 = vunpack.c.l.b16 %v64
  %v473 = vunpack.c.l.b16 %v65
  %v474 = vunpack.c.l.b16 %v66
  %v475 = vunpack.c.l.b16 %v67
  %v476 = vunpack.c.l.b16 %v68
  %v477 = vunpack.c.l.b16 %v69
  %v478 = vunpack.c.l.b16 %v70
  %v479 = vunpack.c.l.b16 %v71
  %v480 = vunpack.c.l.b16 %v72
  %v481 = vunpack.c.l.b16 %v73
  %v482 = vunpack.c.l.b16 %v74
  %v483 = vunpack.c.l.b16 %v75
  %v484 = vunpack.c.l.b16 %v76
  %v485 = vunpack.c.l.b16 %v77
  %v486 = vunpack.c.l.b16 %v78
  %v487 = vunpack.c.l.b16 %v79
  %v488 = vunpack.c.l.b16 %v80
  %v489 = vunpack.c.l.b16 %v81
  %v490 = vunpack.c.l.b16 %v82
  %v491 = vunpack.c.l.b16 %v83
  %v492 = vunpack.c.l.b16 %v84
  %v493 = vunpack.c.l.b16 %v85
  %v494 = vunpack.c.l.b16 %v86
  %v495 = vunpack.c.l.b16 %v87
  %v496 = vunpack.c.l.b16 %v88
  %v497 = vunpack.c.l.b16 %v89
  %v498 = vunpack.c.l.b16 %v90
  %v499 = vunpack.c.l.b16 %v91
  %v500 = vunpack.c.l.b16 %v92
  %v501 = vunpack.c.l.b16 %v93
  %v502 = vunpack.c.l.b16 %v94
  %v503 = vunpack.c.l.b16 %v95
  %v504 = vunpack.c.l.b16 %v96
  %v505 = vunpack.c.l.b16 %v97
  %v506 = vunpack.c.l.b16 %v98
  %v507 = vunpack.c.l.b16 %v99
  %v508 = vunpack.c.l.b16 %v100
  %v509 = vunpack.c.l.b16 %v101
  %v510 = vunpack.c.l.b16 %v102
  %v511 = vunpack.c.l.b16 %v103
  %v512 = vunpack.c.l.b16 %v104
  %v513 = vunpack.c.l.b16 %v105
  %v514 = vunpack.c.l.b16 %v106
  %v515 = vunpack.c.l.b16 %v107
  %v516 = vunpack.c.l.b16 %v108
  %v517 = vunpack.c.l.b16 %v109
  %v518 = vunpack.c.l.b16 %v110
  %v519 = vunpack.c.l.b16 %v111
  %v520 = vunpack.c.l.b16 %v112
  %v521 = vunpack.c.l.b16 %v113
  %v522 = vunpack.c.l.b16 %v114
  %v523 = vunpack.c.l.b16 %v115
  %v524 = vunpack.c.l.b16 %v116
  %v525 = vunpack.c.l.b16 %v117
  %v526 = vunpack.c.l.b16 %v118
  %v527 = vunpack.c.l.b16 %v119
  %v528 = vunpack.c.l.b16 %v120
  %v529 = vunpack.c.l.b16 %v121
  %v530 = vunpack.c.l.b16 %v122
  %v531 = vunpack.c.l.b16 %v123
  %v532 = vunpack.c.l.b16 %v124
  %v533 = vunpack.c.l.b16 %v125
  %v534 = vunpack.c.l.b16 %v126
  %v535 = vunpack.c.l.b16 %v127
  %v536 = vunpack.c.l.b16 %v128
  %v537 = vunpack.c.l.b16 %v129
  %v538 = vunpack.c.l.b16 %v130
  %v539 = vunpack.c.l.b16 %v131
  %v540 = vunpack.c.l.b16 %v132
  %v541 = vunpack.c.l.b16 %v133
  %v542 = vunpack.c.l.b16 %v134
  %v543 = vunpack.c.l.b16 %v135
  %v544 = vunpack.c.l.b16 %v136
  %v545 = vunpack.c.l.b16 %v137
  %v546 = vunpack.c.l.b16 %v138
  %v547 = vunpack.c.l.b16 %v139
  %v548 = vunpack.c.l.b16 %v140
  %v549 = vunpack.c.l.b16 %v141
  %v550 = vunpack.c.l.b16 %v142
  %v551 = vunpack.c.l.b16 %v143
  %v552 = vunpack.c.l.b16 %v144
  %v553 = vunpack.c.l.b16 %v145
  %v554 = vunpack.c.l.b16 %v146
  %v555 = vunpack.c.l.b16 %v147
  %v556 = vunpack.c.l.b16 %v148
  %v557 = vunpack.c.l.b16 %v149
  %v558 = vunpack.c.l.b16 %v150
  %v559 = vunpack.c.l.b16 %v151
  %v560 = vunpack.c.l.b16 %v152
  %v561 = vunpack.c.l.b16 %v153
  %v562 = vunpack.c.l.b16 %v154
  %v563 = vunpack.c.l.b16 %v155
  %v564 = vunpack.c.l.b16 %v156
  %v565 = vunpack.c.l.b16 %v157
  %v566 = vunpack.c.l.b16 %v158
  %v567 = vunpack.c.l.b16 %v159
  %v568 = vunpack.c.l.b16 %v160
  %v569 = vunpack.c.l.b16 %v161
  %v570 = vunpack.c.l.b16 %v162
  %v571 = vunpack.c.l.b16 %v163
  %v572 = vunpack.c.l.b16 %v164
  %v573 = vunpack.c.l.b16 %v165
  %v574 = vunpack.c.l.b16 %v166
  %v575 = vunpack.c.l.b16 %v167
  %v576 = vunpack.c.l.b16 %v168
  %v577 = vunpack.c.l.b16 %v169
  %v578 = vunpack.c.l.b16 %v170
  %v579 = vunpack.c.l.b16 %v171
  %v580 = vunpack.c.l.b16 %v172
  %v581 = vunpack.c.l.b16 %v173
  %v582 = vunpack.c.l.b16 %v174
  %v583 = vunpack.c.l.b16 %v175
  %v584 = vunpack.c.l.b16 %v176
  %v585 = vunpack.c.l.b16 %v177
  %v586 = vunpack.c.l.b16 %v178
  %v587 = vunpack.c.l.b16 %v179
  %v588 = vunpack.c.l.b16 %v180
  %v589 = vunpack.c.l.b16 %v181
  %v590 = vunpack.c.l.b16 %v182
  %v591 = vunpack.c.l.b16 %v183
  %v592 = vunpack.c.l.b16 %v184
  %v593 = vunpack.c.l.b16 %v185
  %v594 = vunpack.c.l.b16 %v186
  %v595 = vunpack.c.l.b16 %v187
  %v596 = vunpack.c.l.b16 %v188
  %v597 = vunpack.c.l.b16 %v189
  %v598 = vunpack.c.l.b16 %v190
  %v599 = vunpack.c.l.b16 %v191
  %v600 = vunpack.c.l.b16 %v192
  %v601 = vunpack.c.l.b16 %v193
  %v602 = vunpack.c.l.b16 %v194
  %v603 = vunpack.c.l.b16 %v195
  %v604 = vunpack.c.l.b16 %v196
  %v605 = vunpack.c.l.b16 %v197
  %v606 = vunpack.c.l.b16 %v198
  %v607 = vunpack.c.l.b16 %v199
  %v608 = vunpack.c.l.b16 %v200
  %v609 = vunpack.c.l.b16 %v201
  %v610 = vunpack.c.l.b16 %v202
  %v611 = vunpack.c.l.b16 %v203
  %v612 = vunpack.c.l.b16 %v204
  %v613 = vunpack.c.l.b16 %v205
  %v614 = vunpack.c.l.b16 %v206
  %v615 = vunpack.c.l.b16 %v207
  %v616 = vunpack.c.l.b16 %v208
  %v617 = vunpack.c.l.b16 %v209
  %v618 = vpack.c.b16 %v423, %v422
  %v619 = vpack.c.b16 %v425, %v424
  %v620 = vpack.c.b16 %v427, %v426
  %v621 = vpack.c.b16 %v429, %v428
  %v622 = vpack.c.b16 %v431, %v430
  %v623 = vpack.c.b16 %v433, %v432
  %v624 = vpack.c.b16 %v435, %v434
  %v625 = vpack.c.b16 %v437, %v436
  %v626 = vpack.c.b16 %v439, %v438
  %v627 = vpack.c.b16 %v441, %v440
  %v628 = vpack.c.b16 %v443, %v442
  %v629 = vpack.c.b16 %v445, %v444
  %v630 = vpack.c.b16 %v447, %v446
  %v631 = vpack.c.b16 %v449, %v448
  %v632 = vpack.c.b16 %v451, %v450
  %v633 = vpack.c.b16 %v453, %v452
  %v634 = vpack.c.b16 %v455, %v454
  %v635 = vpack.c.b16 %v457, %v456
  %v636 = vpack.c.b16 %v459, %v458
  %v637 = vpack.c.b16 %v461, %v460
  %v638 = vpack.c.b16 %v463, %v462
  %v639 = vpack.c.b16 %v465, %v464
  %v640 = vpack.c.b16 %v467, %v466
  %v641 = vpack.c.b16 %v469, %v468
  %v642 = vpack.c.b16 %v471, %v470
  %v643 = vpack.c.b16 %v473, %v472
  %v644 = vpack.c.b16 %v475, %v474
  %v645 = vpack.c.b16 %v477, %v476
  %v646 = vpack.c.b16 %v479, %v478
  %v647 = vpack.c.b16 %v481, %v480
  %v648 = vpack.c.b16 %v483, %v482
  %v649 = vpack.c.b16 %v485, %v484
  %v650 = vpack.c.b16 %v487, %v486
  %v651 = vpack.c.b16 %v489, %v488
  %v652 = vpack.c.b16 %v491, %v490
  %v653 = vpack.c.b16 %v493, %v492
  %v654 = vpack.c.b16 %v495, %v494
  %v655 = vpack.c.b16 %v497, %v496
  %v656 = vpack.c.b16 %v499, %v498
  %v657 = vpack.c.b16 %v501, %v500
  %v658 = vpack.c.b16 %v503, %v502
  %v659 = vpack.c.b16 %v505, %v504
  %v660 = vpack.c.b16 %v507, %v506
  %v661 = vpack.c.b16 %v509, %v508
  %v662 = vpack.c.b16 %v511, %v510
  %v663 = vpack.c.b16 %v513, %v512
  %v664 = vpack.c.b16 %v515, %v514
  %v665 = vpack.c.b16 %v517, %v516
  %v666 = vpack.c.b16 %v519, %v518
  %v667 = vpack.c.b16 %v521, %v520
  %v668 = vpack.c.b16 %v523, %v522
  %v669 = vpack.c.b16 %v525, %v524
  %v670 = vpack.c.b16 %v527, %v526
  %v671 = vpack.c.b16 %v529, %v528
  %v672 = vpack.c.b16 %v531, %v530
  %v673 = vpack.c.b16 %v533, %v532
  %v674 = vpack.c.b16 %v535, %v534
  %v675 = vpack.c.b16 %v537, %v536
  %v676 = vpack.c.b16 %v539, %v538
  %v677 = vpack.c.b16 %v541, %v540
  %v678 = vpack.c.b16 %v543, %v542
  %v679 = vpack.c.b16 %v545, %v544
  %v680 = vpack.c.b16 %v547, %v546
  %v681 = vpack.c.b16 %v549, %v548
  %v682 = vpack.c.b16 %v551, %v550
  %v683 = vpack.c.b16 %v553, %v552
  %v684 = vpack.c.b16 %v555, %v554
  %v685 = vpack.c.b16 %v557, %v556
  %v686 = vpack.c.b16 %v559, %v558
  %v687 = vpack.c.b16 %v561, %v560
  %v688 = vpack.c.b16 %v563, %v562
  %v689 = vpack.c.b16 %v565, %v564
  %v690 = vpack.c.b16 %v567, %v566
  %v691 = vpack.c.b16 %v569, %v568
  %v692 = vpack.c.b16 %v571, %v570
  %v693 = vpack.c.b16 %v573, %v572
  %v694 = vpack.c.b16 %v575, %v574
  %v695 = vpack.c.b16 %v577, %v576
  %v696 = vpack.c.b16 %v579, %v578
  %v697 = vpack.c.b16 %v581, %v580
  %v698 = vpack.c.b16 %v583, %v582
  %v699 = vpack.c.b16 %v585, %v584
  %v700 = vpack.c.b16 %v587, %v586
  %v701 = vpack.c.b16 %v589, %v588
  %v702 = vpack.c.b16 %v591, %v590
  %v703 = vpack.c.b16 %v593, %v592
  %v704 = vpack.c.b16 %v595, %v594
  %v705 = vpack.c.b16 %v597, %v596
  %v706 = vpack.c.b16 %v599, %v598
  %v707 = vpack.c.b16 %v601, %v600
  %v708 = vpack.c.b16 %v603, %v602
  %v709 = vpack.c.b16 %v605, %v604
  %v710 = vpack.c.b16 %v607, %v606
  %v711 = vpack.c.b16 %v609, %v608
  %v712 = vpack.c.b16 %v611, %v610
  %v713 = vpack.c.b16 %v613, %v612
  %v714 = vpack.c.b16 %v615, %v614
  %v715 = vpack.c.b16 %v617, %v616
  %v830 = vunpack.c.l.b16 %v210
  %v831 = vunpack.c.l.b16 %v211
  %v832 = vunpack.c.l.b16 %v212
  %v833 = vunpack.c.l.b16 %v213
  %v834 = vunpack.c.l.b16 %v214
  %v835 = vunpack.c.l.b16 %v215
  %v836 = vunpack.c.l.b16 %v216
  %v837 = vunpack.c.l.b16 %v217
  %v838 = vunpack.c.l.b16 %v218
  %v839 = vunpack.c.l.b16 %v219
  %v840 = vunpack.c.l.b16 %v220
  %v841 = vunpack.c.l.b16 %v221
  %v842 = vunpack.c.l.b16 %v222
  %v843 = vunpack.c.l.b16 %v223
  %v844 = vunpack.c.l.b16 %v224
  %v845 = vunpack.c.l.b16 %v225
  %v846 = vpack.c.b16 %v831, %v830
  %v847 = vpack.c.b16 %v833, %v832
  %v848 = vpack.c.b16 %v835, %v834
  %v849 = vpack.c.b16 %v837, %v836
  %v850 = vpack.c.b16 %v839, %v838
  %v851 = vpack.c.b16 %v841, %v840
  %v852 = vpack.c.b16 %v843, %v842
  %v853 = vpack.c.b16 %v845, %v844
  %862 = vmatpush.bf16.msra.mxu0 %v853
  %863 = vmatpush.bf16.msra.mxu0 %v852
  %864 = vmatpush.bf16.msra.mxu0 %v851
  %865 = vmatpush.bf16.msra.mxu0 %v850
  %866 = vmatpush.bf16.msra.mxu0 %v849
  %867 = vmatpush.bf16.msra.mxu0 %v848
  %868 = vmatpush.bf16.msra.mxu0 %v847
  %869 = vmatpush.bf16.msra.mxu0 %v846
  %870 = vmatmul.bf16.gmra.mxu0 %v618
  %v871 = vpop.f32.mrf.mxu0
  %v872 = vadd.f32 0.0, %v871
  %v873 = vpop.f32.mrf.mxu0
  %v874 = vadd.f32 0.0, %v873
  %875 = vmatmul.bf16.gmra.mxu0 %v619
  %v876 = vpop.f32.mrf.mxu0
  %v877 = vadd.f32 0.0, %v876
  %v878 = vpop.f32.mrf.mxu0
  %v879 = vadd.f32 0.0, %v878
  %880 = vmatmul.bf16.gmra.mxu0 %v620
  %v881 = vpop.f32.mrf.mxu0
  %v882 = vadd.f32 0.0, %v881
  %v883 = vpop.f32.mrf.mxu0
  %v884 = vadd.f32 0.0, %v883
  %885 = vmatmul.bf16.gmra.mxu0 %v621
  %v886 = vpop.f32.mrf.mxu0
  %v887 = vadd.f32 0.0, %v886
  %v888 = vpop.f32.mrf.mxu0
  %v889 = vadd.f32 0.0, %v888
  %890 = vmatmul.bf16.gmra.mxu0 %v622
  %v891 = vpop.f32.mrf.mxu0
  %v892 = vadd.f32 0.0, %v891
  %v893 = vpop.f32.mrf.mxu0
  %v894 = vadd.f32 0.0, %v893
  %895 = vmatmul.bf16.gmra.mxu0 %v623
  %v896 = vpop.f32.mrf.mxu0
  %v897 = vadd.f32 0.0, %v896
  %v898 = vpop.f32.mrf.mxu0
  %v899 = vadd.f32 0.0, %v898
  %900 = vmatmul.bf16.gmra.mxu0 %v624
  %v901 = vpop.f32.mrf.mxu0
  %v902 = vadd.f32 0.0, %v901
  %v903 = vpop.f32.mrf.mxu0
  %v904 = vadd.f32 0.0, %v903
  %905 = vmatmul.bf16.gmra.mxu0 %v625
  %v906 = vpop.f32.mrf.mxu0
  %v907 = vadd.f32 0.0, %v906
  %v908 = vpop.f32.mrf.mxu0
  %v909 = vadd.f32 0.0, %v908
  %910 = vmatmul.bf16.gmra.mxu0 %v626
  %v911 = vpop.f32.mrf.mxu0
  %v912 = vadd.f32 0.0, %v911
  %v913 = vpop.f32.mrf.mxu0
  %v914 = vadd.f32 0.0, %v913
  %915 = vmatmul.bf16.gmra.mxu0 %v627
  %v916 = vpop.f32.mrf.mxu0
  %v917 = vadd.f32 0.0, %v916
  %v918 = vpop.f32.mrf.mxu0
  %v919 = vadd.f32 0.0, %v918
  %920 = vmatmul.bf16.gmra.mxu0 %v628
  %v921 = vpop.f32.mrf.mxu0
  %v922 = vadd.f32 0.0, %v921
  %v923 = vpop.f32.mrf.mxu0
  %v924 = vadd.f32 0.0, %v923
  %925 = vmatmul.bf16.gmra.mxu0 %v629
  %v926 = vpop.f32.mrf.mxu0
  %v927 = vadd.f32 0.0, %v926
  %v928 = vpop.f32.mrf.mxu0
  %v929 = vadd.f32 0.0, %v928
  %930 = vmatmul.bf16.gmra.mxu0 %v630
  %v931 = vpop.f32.mrf.mxu0
  %v932 = vadd.f32 0.0, %v931
  %v933 = vpop.f32.mrf.mxu0
  %v934 = vadd.f32 0.0, %v933
  %935 = vmatmul.bf16.gmra.mxu0 %v631
  %v936 = vpop.f32.mrf.mxu0
  %v937 = vadd.f32 0.0, %v936
  %v938 = vpop.f32.mrf.mxu0
  %v939 = vadd.f32 0.0, %v938
  %940 = vmatmul.bf16.gmra.mxu0 %v632
  %v941 = vpop.f32.mrf.mxu0
  %v942 = vadd.f32 0.0, %v941
  %v943 = vpop.f32.mrf.mxu0
  %v944 = vadd.f32 0.0, %v943
  %945 = vmatmul.bf16.gmra.mxu0 %v633
  %v946 = vpop.f32.mrf.mxu0
  %v947 = vadd.f32 0.0, %v946
  %v948 = vpop.f32.mrf.mxu0
  %v949 = vadd.f32 0.0, %v948
  %950 = vmatmul.bf16.gmra.mxu0 %v634
  %v951 = vpop.f32.mrf.mxu0
  %v952 = vadd.f32 0.0, %v951
  %v953 = vpop.f32.mrf.mxu0
  %v954 = vadd.f32 0.0, %v953
  %955 = vmatmul.bf16.gmra.mxu0 %v635
  %v956 = vpop.f32.mrf.mxu0
  %v957 = vadd.f32 0.0, %v956
  %v958 = vpop.f32.mrf.mxu0
  %v959 = vadd.f32 0.0, %v958
  %960 = vmatmul.bf16.gmra.mxu0 %v636
  %v961 = vpop.f32.mrf.mxu0
  %v962 = vadd.f32 0.0, %v961
  %v963 = vpop.f32.mrf.mxu0
  %v964 = vadd.f32 0.0, %v963
  %965 = vmatmul.bf16.gmra.mxu0 %v637
  %v966 = vpop.f32.mrf.mxu0
  %v967 = vadd.f32 0.0, %v966
  %v968 = vpop.f32.mrf.mxu0
  %v969 = vadd.f32 0.0, %v968
  %970 = vmatmul.bf16.gmra.mxu0 %v638
  %v971 = vpop.f32.mrf.mxu0
  %v972 = vadd.f32 0.0, %v971
  %v973 = vpop.f32.mrf.mxu0
  %v974 = vadd.f32 0.0, %v973
  %975 = vmatmul.bf16.gmra.mxu0 %v639
  %v976 = vpop.f32.mrf.mxu0
  %v977 = vadd.f32 0.0, %v976
  %v978 = vpop.f32.mrf.mxu0
  %v979 = vadd.f32 0.0, %v978
  %980 = vmatmul.bf16.gmra.mxu0 %v640
  %v981 = vpop.f32.mrf.mxu0
  %v982 = vadd.f32 0.0, %v981
  %v983 = vpop.f32.mrf.mxu0
  %v984 = vadd.f32 0.0, %v983
  %985 = vmatmul.bf16.gmra.mxu0 %v641
  %v986 = vpop.f32.mrf.mxu0
  %v987 = vadd.f32 0.0, %v986
  %v988 = vpop.f32.mrf.mxu0
  %v989 = vadd.f32 0.0, %v988
  %990 = vmatmul.bf16.gmra.mxu0 %v642
  %v991 = vpop.f32.mrf.mxu0
  %v992 = vadd.f32 0.0, %v991
  %v993 = vpop.f32.mrf.mxu0
  %v994 = vadd.f32 0.0, %v993
  %995 = vmatmul.bf16.gmra.mxu0 %v643
  %v996 = vpop.f32.mrf.mxu0
  %v997 = vadd.f32 0.0, %v996
  %v998 = vpop.f32.mrf.mxu0
  %v999 = vadd.f32 0.0, %v998
  %1000 = vmatmul.bf16.gmra.mxu0 %v644
  %v1001 = vpop.f32.mrf.mxu0
  %v1002 = vadd.f32 0.0, %v1001
  %v1003 = vpop.f32.mrf.mxu0
  %v1004 = vadd.f32 0.0, %v1003
  %1005 = vmatmul.bf16.gmra.mxu0 %v645
  %v1006 = vpop.f32.mrf.mxu0
  %v1007 = vadd.f32 0.0, %v1006
  %v1008 = vpop.f32.mrf.mxu0
  %v1009 = vadd.f32 0.0, %v1008
  %1010 = vmatmul.bf16.gmra.mxu0 %v646
  %v1011 = vpop.f32.mrf.mxu0
  %v1012 = vadd.f32 0.0, %v1011
  %v1013 = vpop.f32.mrf.mxu0
  %v1014 = vadd.f32 0.0, %v1013
  %1015 = vmatmul.bf16.gmra.mxu0 %v647
  %v1016 = vpop.f32.mrf.mxu0
  %v1017 = vadd.f32 0.0, %v1016
  %v1018 = vpop.f32.mrf.mxu0
  %v1019 = vadd.f32 0.0, %v1018
  %1020 = vmatmul.bf16.gmra.mxu0 %v648
  %v1021 = vpop.f32.mrf.mxu0
  %v1022 = vadd.f32 0.0, %v1021
  %v1023 = vpop.f32.mrf.mxu0
  %v1024 = vadd.f32 0.0, %v1023
  %1025 = vmatmul.bf16.gmra.mxu0 %v649
  %v1026 = vpop.f32.mrf.mxu0
  %v1027 = vadd.f32 0.0, %v1026
  %v1028 = vpop.f32.mrf.mxu0
  %v1029 = vadd.f32 0.0, %v1028
  %1030 = vmatmul.bf16.gmra.mxu0 %v650
  %v1031 = vpop.f32.mrf.mxu0
  %v1032 = vadd.f32 0.0, %v1031
  %v1033 = vpop.f32.mrf.mxu0
  %v1034 = vadd.f32 0.0, %v1033
  %1035 = vmatmul.bf16.gmra.mxu0 %v651
  %v1036 = vpop.f32.mrf.mxu0
  %v1037 = vadd.f32 0.0, %v1036
  %v1038 = vpop.f32.mrf.mxu0
  %v1039 = vadd.f32 0.0, %v1038
  %1040 = vmatmul.bf16.gmra.mxu0 %v652
  %v1041 = vpop.f32.mrf.mxu0
  %v1042 = vadd.f32 0.0, %v1041
  %v1043 = vpop.f32.mrf.mxu0
  %v1044 = vadd.f32 0.0, %v1043
  %1045 = vmatmul.bf16.gmra.mxu0 %v653
  %v1046 = vpop.f32.mrf.mxu0
  %v1047 = vadd.f32 0.0, %v1046
  %v1048 = vpop.f32.mrf.mxu0
  %v1049 = vadd.f32 0.0, %v1048
  %1050 = vmatmul.bf16.gmra.mxu0 %v654
  %v1051 = vpop.f32.mrf.mxu0
  %v1052 = vadd.f32 0.0, %v1051
  %v1053 = vpop.f32.mrf.mxu0
  %v1054 = vadd.f32 0.0, %v1053
  %1055 = vmatmul.bf16.gmra.mxu0 %v655
  %v1056 = vpop.f32.mrf.mxu0
  %v1057 = vadd.f32 0.0, %v1056
  %v1058 = vpop.f32.mrf.mxu0
  %v1059 = vadd.f32 0.0, %v1058
  %1060 = vmatmul.bf16.gmra.mxu0 %v656
  %v1061 = vpop.f32.mrf.mxu0
  %v1062 = vadd.f32 0.0, %v1061
  %v1063 = vpop.f32.mrf.mxu0
  %v1064 = vadd.f32 0.0, %v1063
  %1065 = vmatmul.bf16.gmra.mxu0 %v657
  %v1066 = vpop.f32.mrf.mxu0
  %v1067 = vadd.f32 0.0, %v1066
  %v1068 = vpop.f32.mrf.mxu0
  %v1069 = vadd.f32 0.0, %v1068
  %1070 = vmatmul.bf16.gmra.mxu0 %v658
  %v1071 = vpop.f32.mrf.mxu0
  %v1072 = vadd.f32 0.0, %v1071
  %v1073 = vpop.f32.mrf.mxu0
  %v1074 = vadd.f32 0.0, %v1073
  %1075 = vmatmul.bf16.gmra.mxu0 %v659
  %v1076 = vpop.f32.mrf.mxu0
  %v1077 = vadd.f32 0.0, %v1076
  %v1078 = vpop.f32.mrf.mxu0
  %v1079 = vadd.f32 0.0, %v1078
  %1080 = vmatmul.bf16.gmra.mxu0 %v660
  %v1081 = vpop.f32.mrf.mxu0
  %v1082 = vadd.f32 0.0, %v1081
  %v1083 = vpop.f32.mrf.mxu0
  %v1084 = vadd.f32 0.0, %v1083
  %1085 = vmatmul.bf16.gmra.mxu0 %v661
  %v1086 = vpop.f32.mrf.mxu0
  %v1087 = vadd.f32 0.0, %v1086
  %v1088 = vpop.f32.mrf.mxu0
  %v1089 = vadd.f32 0.0, %v1088
  %1090 = vmatmul.bf16.gmra.mxu0 %v662
  %v1091 = vpop.f32.mrf.mxu0
  %v1092 = vadd.f32 0.0, %v1091
  %v1093 = vpop.f32.mrf.mxu0
  %v1094 = vadd.f32 0.0, %v1093
  %1095 = vmatmul.bf16.gmra.mxu0 %v663
  %v1096 = vpop.f32.mrf.mxu0
  %v1097 = vadd.f32 0.0, %v1096
  %v1098 = vpop.f32.mrf.mxu0
  %v1099 = vadd.f32 0.0, %v1098
  %1100 = vmatmul.bf16.gmra.mxu0 %v664
  %v1101 = vpop.f32.mrf.mxu0
  %v1102 = vadd.f32 0.0, %v1101
  %v1103 = vpop.f32.mrf.mxu0
  %v1104 = vadd.f32 0.0, %v1103
  %1105 = vmatmul.bf16.gmra.mxu0 %v665
  %v1106 = vpop.f32.mrf.mxu0
  %v1107 = vadd.f32 0.0, %v1106
  %v1108 = vpop.f32.mrf.mxu0
  %v1109 = vadd.f32 0.0, %v1108
  %1110 = vmatmul.bf16.gmra.mxu0 %v666
  %v1111 = vpop.f32.mrf.mxu0
  %v1112 = vadd.f32 0.0, %v1111
  %v1113 = vpop.f32.mrf.mxu0
  %v1114 = vadd.f32 0.0, %v1113
  %1115 = vmatmul.bf16.gmra.mxu0 %v667
  %v1116 = vpop.f32.mrf.mxu0
  %v1117 = vadd.f32 0.0, %v1116
  %v1118 = vpop.f32.mrf.mxu0
  %v1119 = vadd.f32 0.0, %v1118
  %1120 = vmatmul.bf16.gmra.mxu0 %v668
  %v1121 = vpop.f32.mrf.mxu0
  %v1122 = vadd.f32 0.0, %v1121
  %v1123 = vpop.f32.mrf.mxu0
  %v1124 = vadd.f32 0.0, %v1123
  %1125 = vmatmul.bf16.gmra.mxu0 %v669
  %v1126 = vpop.f32.mrf.mxu0
  %v1127 = vadd.f32 0.0, %v1126
  %v1128 = vpop.f32.mrf.mxu0
  %v1129 = vadd.f32 0.0, %v1128
  %1130 = vmatmul.bf16.gmra.mxu0 %v670
  %v1131 = vpop.f32.mrf.mxu0
  %v1132 = vadd.f32 0.0, %v1131
  %v1133 = vpop.f32.mrf.mxu0
  %v1134 = vadd.f32 0.0, %v1133
  %1135 = vmatmul.bf16.gmra.mxu0 %v671
  %v1136 = vpop.f32.mrf.mxu0
  %v1137 = vadd.f32 0.0, %v1136
  %v1138 = vpop.f32.mrf.mxu0
  %v1139 = vadd.f32 0.0, %v1138
  %1140 = vmatmul.bf16.gmra.mxu0 %v672
  %v1141 = vpop.f32.mrf.mxu0
  %v1142 = vadd.f32 0.0, %v1141
  %v1143 = vpop.f32.mrf.mxu0
  %v1144 = vadd.f32 0.0, %v1143
  %1145 = vmatmul.bf16.gmra.mxu0 %v673
  %v1146 = vpop.f32.mrf.mxu0
  %v1147 = vadd.f32 0.0, %v1146
  %v1148 = vpop.f32.mrf.mxu0
  %v1149 = vadd.f32 0.0, %v1148
  %1150 = vmatmul.bf16.gmra.mxu0 %v674
  %v1151 = vpop.f32.mrf.mxu0
  %v1152 = vadd.f32 0.0, %v1151
  %v1153 = vpop.f32.mrf.mxu0
  %v1154 = vadd.f32 0.0, %v1153
  %1155 = vmatmul.bf16.gmra.mxu0 %v675
  %v1156 = vpop.f32.mrf.mxu0
  %v1157 = vadd.f32 0.0, %v1156
  %v1158 = vpop.f32.mrf.mxu0
  %v1159 = vadd.f32 0.0, %v1158
  %1160 = vmatmul.bf16.gmra.mxu0 %v676
  %v1161 = vpop.f32.mrf.mxu0
  %v1162 = vadd.f32 0.0, %v1161
  %v1163 = vpop.f32.mrf.mxu0
  %v1164 = vadd.f32 0.0, %v1163
  %1165 = vmatmul.bf16.gmra.mxu0 %v677
  %v1166 = vpop.f32.mrf.mxu0
  %v1167 = vadd.f32 0.0, %v1166
  %v1168 = vpop.f32.mrf.mxu0
  %v1169 = vadd.f32 0.0, %v1168
  %1170 = vmatmul.bf16.gmra.mxu0 %v678
  %v1171 = vpop.f32.mrf.mxu0
  %v1172 = vadd.f32 0.0, %v1171
  %v1173 = vpop.f32.mrf.mxu0
  %v1174 = vadd.f32 0.0, %v1173
  %1175 = vmatmul.bf16.gmra.mxu0 %v679
  %v1176 = vpop.f32.mrf.mxu0
  %v1177 = vadd.f32 0.0, %v1176
  %v1178 = vpop.f32.mrf.mxu0
  %v1179 = vadd.f32 0.0, %v1178
  %1180 = vmatmul.bf16.gmra.mxu0 %v680
  %v1181 = vpop.f32.mrf.mxu0
  %v1182 = vadd.f32 0.0, %v1181
  %v1183 = vpop.f32.mrf.mxu0
  %v1184 = vadd.f32 0.0, %v1183
  %1185 = vmatmul.bf16.gmra.mxu0 %v681
  %v1186 = vpop.f32.mrf.mxu0
  %v1187 = vadd.f32 0.0, %v1186
  %v1188 = vpop.f32.mrf.mxu0
  %v1189 = vadd.f32 0.0, %v1188
  %1190 = vmatmul.bf16.gmra.mxu0 %v682
  %v1191 = vpop.f32.mrf.mxu0
  %v1192 = vadd.f32 0.0, %v1191
  %v1193 = vpop.f32.mrf.mxu0
  %v1194 = vadd.f32 0.0, %v1193
  %1195 = vmatmul.bf16.gmra.mxu0 %v683
  %v1196 = vpop.f32.mrf.mxu0
  %v1197 = vadd.f32 0.0, %v1196
  %v1198 = vpop.f32.mrf.mxu0
  %v1199 = vadd.f32 0.0, %v1198
  %1200 = vmatmul.bf16.gmra.mxu0 %v684
  %v1201 = vpop.f32.mrf.mxu0
  %v1202 = vadd.f32 0.0, %v1201
  %v1203 = vpop.f32.mrf.mxu0
  %v1204 = vadd.f32 0.0, %v1203
  %1205 = vmatmul.bf16.gmra.mxu0 %v685
  %v1206 = vpop.f32.mrf.mxu0
  %v1207 = vadd.f32 0.0, %v1206
  %v1208 = vpop.f32.mrf.mxu0
  %v1209 = vadd.f32 0.0, %v1208
  %1210 = vmatmul.bf16.gmra.mxu0 %v686
  %v1211 = vpop.f32.mrf.mxu0
  %v1212 = vadd.f32 0.0, %v1211
  %v1213 = vpop.f32.mrf.mxu0
  %v1214 = vadd.f32 0.0, %v1213
  %1215 = vmatmul.bf16.gmra.mxu0 %v687
  %v1216 = vpop.f32.mrf.mxu0
  %v1217 = vadd.f32 0.0, %v1216
  %v1218 = vpop.f32.mrf.mxu0
  %v1219 = vadd.f32 0.0, %v1218
  %1220 = vmatmul.bf16.gmra.mxu0 %v688
  %v1221 = vpop.f32.mrf.mxu0
  %v1222 = vadd.f32 0.0, %v1221
  %v1223 = vpop.f32.mrf.mxu0
  %v1224 = vadd.f32 0.0, %v1223
  %1225 = vmatmul.bf16.gmra.mxu0 %v689
  %v1226 = vpop.f32.mrf.mxu0
  %v1227 = vadd.f32 0.0, %v1226
  %v1228 = vpop.f32.mrf.mxu0
  %v1229 = vadd.f32 0.0, %v1228
  %1230 = vmatmul.bf16.gmra.mxu0 %v690
  %v1231 = vpop.f32.mrf.mxu0
  %v1232 = vadd.f32 0.0, %v1231
  %v1233 = vpop.f32.mrf.mxu0
  %v1234 = vadd.f32 0.0, %v1233
  %1235 = vmatmul.bf16.gmra.mxu0 %v691
  %v1236 = vpop.f32.mrf.mxu0
  %v1237 = vadd.f32 0.0, %v1236
  %v1238 = vpop.f32.mrf.mxu0
  %v1239 = vadd.f32 0.0, %v1238
  %1240 = vmatmul.bf16.gmra.mxu0 %v692
  %v1241 = vpop.f32.mrf.mxu0
  %v1242 = vadd.f32 0.0, %v1241
  %v1243 = vpop.f32.mrf.mxu0
  %v1244 = vadd.f32 0.0, %v1243
  %1245 = vmatmul.bf16.gmra.mxu0 %v693
  %v1246 = vpop.f32.mrf.mxu0
  %v1247 = vadd.f32 0.0, %v1246
  %v1248 = vpop.f32.mrf.mxu0
  %v1249 = vadd.f32 0.0, %v1248
  %1250 = vmatmul.bf16.gmra.mxu0 %v694
  %v1251 = vpop.f32.mrf.mxu0
  %v1252 = vadd.f32 0.0, %v1251
  %v1253 = vpop.f32.mrf.mxu0
  %v1254 = vadd.f32 0.0, %v1253
  %1255 = vmatmul.bf16.gmra.mxu0 %v695
  %v1256 = vpop.f32.mrf.mxu0
  %v1257 = vadd.f32 0.0, %v1256
  %v1258 = vpop.f32.mrf.mxu0
  %v1259 = vadd.f32 0.0, %v1258
  %1260 = vmatmul.bf16.gmra.mxu0 %v696
  %v1261 = vpop.f32.mrf.mxu0
  %v1262 = vadd.f32 0.0, %v1261
  %v1263 = vpop.f32.mrf.mxu0
  %v1264 = vadd.f32 0.0, %v1263
  %1265 = vmatmul.bf16.gmra.mxu0 %v697
  %v1266 = vpop.f32.mrf.mxu0
  %v1267 = vadd.f32 0.0, %v1266
  %v1268 = vpop.f32.mrf.mxu0
  %v1269 = vadd.f32 0.0, %v1268
  %1270 = vmatmul.bf16.gmra.mxu0 %v698
  %v1271 = vpop.f32.mrf.mxu0
  %v1272 = vadd.f32 0.0, %v1271
  %v1273 = vpop.f32.mrf.mxu0
  %v1274 = vadd.f32 0.0, %v1273
  %1275 = vmatmul.bf16.gmra.mxu0 %v699
  %v1276 = vpop.f32.mrf.mxu0
  %v1277 = vadd.f32 0.0, %v1276
  %v1278 = vpop.f32.mrf.mxu0
  %v1279 = vadd.f32 0.0, %v1278
  %1280 = vmatmul.bf16.gmra.mxu0 %v700
  %v1281 = vpop.f32.mrf.mxu0
  %v1282 = vadd.f32 0.0, %v1281
  %v1283 = vpop.f32.mrf.mxu0
  %v1284 = vadd.f32 0.0, %v1283
  %1285 = vmatmul.bf16.gmra.mxu0 %v701
  %v1286 = vpop.f32.mrf.mxu0
  %v1287 = vadd.f32 0.0, %v1286
  %v1288 = vpop.f32.mrf.mxu0
  %v1289 = vadd.f32 0.0, %v1288
  %1290 = vmatmul.bf16.gmra.mxu0 %v702
  %v1291 = vpop.f32.mrf.mxu0
  %v1292 = vadd.f32 0.0, %v1291
  %v1293 = vpop.f32.mrf.mxu0
  %v1294 = vadd.f32 0.0, %v1293
  %1295 = vmatmul.bf16.gmra.mxu0 %v703
  %v1296 = vpop.f32.mrf.mxu0
  %v1297 = vadd.f32 0.0, %v1296
  %v1298 = vpop.f32.mrf.mxu0
  %v1299 = vadd.f32 0.0, %v1298
  %1300 = vmatmul.bf16.gmra.mxu0 %v704
  %v1301 = vpop.f32.mrf.mxu0
  %v1302 = vadd.f32 0.0, %v1301
  %v1303 = vpop.f32.mrf.mxu0
  %v1304 = vadd.f32 0.0, %v1303
  %1305 = vmatmul.bf16.gmra.mxu0 %v705
  %v1306 = vpop.f32.mrf.mxu0
  %v1307 = vadd.f32 0.0, %v1306
  %v1308 = vpop.f32.mrf.mxu0
  %v1309 = vadd.f32 0.0, %v1308
  %1310 = vmatmul.bf16.gmra.mxu0 %v706
  %v1311 = vpop.f32.mrf.mxu0
  %v1312 = vadd.f32 0.0, %v1311
  %v1313 = vpop.f32.mrf.mxu0
  %v1314 = vadd.f32 0.0, %v1313
  %1315 = vmatmul.bf16.gmra.mxu0 %v707
  %v1316 = vpop.f32.mrf.mxu0
  %v1317 = vadd.f32 0.0, %v1316
  %v1318 = vpop.f32.mrf.mxu0
  %v1319 = vadd.f32 0.0, %v1318
  %1320 = vmatmul.bf16.gmra.mxu0 %v708
  %v1321 = vpop.f32.mrf.mxu0
  %v1322 = vadd.f32 0.0, %v1321
  %v1323 = vpop.f32.mrf.mxu0
  %v1324 = vadd.f32 0.0, %v1323
  %1325 = vmatmul.bf16.gmra.mxu0 %v709
  %v1326 = vpop.f32.mrf.mxu0
  %v1327 = vadd.f32 0.0, %v1326
  %v1328 = vpop.f32.mrf.mxu0
  %v1329 = vadd.f32 0.0, %v1328
  %1330 = vmatmul.bf16.gmra.mxu0 %v710
  %v1331 = vpop.f32.mrf.mxu0
  %v1332 = vadd.f32 0.0, %v1331
  %v1333 = vpop.f32.mrf.mxu0
  %v1334 = vadd.f32 0.0, %v1333
  %1335 = vmatmul.bf16.gmra.mxu0 %v711
  %v1336 = vpop.f32.mrf.mxu0
  %v1337 = vadd.f32 0.0, %v1336
  %v1338 = vpop.f32.mrf.mxu0
  %v1339 = vadd.f32 0.0, %v1338
  %1340 = vmatmul.bf16.gmra.mxu0 %v712
  %v1341 = vpop.f32.mrf.mxu0
  %v1342 = vadd.f32 0.0, %v1341
  %v1343 = vpop.f32.mrf.mxu0
  %v1344 = vadd.f32 0.0, %v1343
  %1345 = vmatmul.bf16.gmra.mxu0 %v713
  %v1346 = vpop.f32.mrf.mxu0
  %v1347 = vadd.f32 0.0, %v1346
  %v1348 = vpop.f32.mrf.mxu0
  %v1349 = vadd.f32 0.0, %v1348
  %1350 = vmatmul.bf16.gmra.mxu0 %v714
  %v1351 = vpop.f32.mrf.mxu0
  %v1352 = vadd.f32 0.0, %v1351
  %v1353 = vpop.f32.mrf.mxu0
  %v1354 = vadd.f32 0.0, %v1353
  %1355 = vmatmul.bf16.gmra.mxu0 %v715
  %v1356 = vpop.f32.mrf.mxu0
  %v1357 = vadd.f32 0.0, %v1356
  %v1358 = vpop.f32.mrf.mxu0
  %v1359 = vadd.f32 0.0, %v1358
  %1360 = vdwg.mxu0
  %v1361 = vmax.f32 %v872, %v994
  %v1362 = vmax.f32 %v874, %v997
  %v1363 = vmax.f32 %v877, %v999
  %v1364 = vmax.f32 %v879, %v1002
  %v1365 = vmax.f32 %v882, %v1004
  %v1366 = vmax.f32 %v884, %v1007
  %v1367 = vmax.f32 %v887, %v1009
  %v1368 = vmax.f32 %v889, %v1012
  %v1369 = vmax.f32 %v892, %v1014
  %v1370 = vmax.f32 %v894, %v1017
  %v1371 = vmax.f32 %v897, %v1019
  %v1372 = vmax.f32 %v899, %v1022
  %v1373 = vmax.f32 %v902, %v1024
  %v1374 = vmax.f32 %v904, %v1027
  %v1375 = vmax.f32 %v907, %v1029
  %v1376 = vmax.f32 %v909, %v1032
  %v1377 = vmax.f32 %v912, %v1034
  %v1378 = vmax.f32 %v914, %v1037
  %v1379 = vmax.f32 %v917, %v1039
  %v1380 = vmax.f32 %v919, %v1042
  %v1381 = vmax.f32 %v922, %v1044
  %v1382 = vmax.f32 %v924, %v1047
  %v1383 = vmax.f32 %v927, %v1049
  %v1384 = vmax.f32 %v929, %v1052
  %v1385 = vmax.f32 %v932, %v1054
  %v1386 = vmax.f32 %v934, %v1057
  %v1387 = vmax.f32 %v937, %v1059
  %v1388 = vmax.f32 %v939, %v1062
  %v1389 = vmax.f32 %v942, %v1064
  %v1390 = vmax.f32 %v944, %v1067
  %v1391 = vmax.f32 %v947, %v1069
  %v1392 = vmax.f32 %v949, %v1072
  %v1393 = vmax.f32 %v952, %v1074
  %v1394 = vmax.f32 %v954, %v1077
  %v1395 = vmax.f32 %v957, %v1079
  %v1396 = vmax.f32 %v959, %v1082
  %v1397 = vmax.f32 %v962, %v1084
  %v1398 = vmax.f32 %v964, %v1087
  %v1399 = vmax.f32 %v967, %v1089
  %v1400 = vmax.f32 %v969, %v1092
  %v1401 = vmax.f32 %v972, %v1094
  %v1402 = vmax.f32 %v974, %v1097
  %v1403 = vmax.f32 %v977, %v1099
  %v1404 = vmax.f32 %v979, %v1102
  %v1405 = vmax.f32 %v982, %v1104
  %v1406 = vmax.f32 %v984, %v1107
  %v1407 = vmax.f32 %v987, %v1109
  %v1408 = vmax.f32 %v989, %v1112
  %v1409 = vmax.f32 %v992, %v1114
  %v1410 = vmax.f32 %v1117, %v1239
  %v1411 = vmax.f32 %v1119, %v1242
  %v1412 = vmax.f32 %v1122, %v1244
  %v1413 = vmax.f32 %v1124, %v1247
  %v1414 = vmax.f32 %v1127, %v1249
  %v1415 = vmax.f32 %v1129, %v1252
  %v1416 = vmax.f32 %v1132, %v1254
  %v1417 = vmax.f32 %v1134, %v1257
  %v1418 = vmax.f32 %v1137, %v1259
  %v1419 = vmax.f32 %v1139, %v1262
  %v1420 = vmax.f32 %v1142, %v1264
  %v1421 = vmax.f32 %v1144, %v1267
  %v1422 = vmax.f32 %v1147, %v1269
  %v1423 = vmax.f32 %v1149, %v1272
  %v1424 = vmax.f32 %v1152, %v1274
  %v1425 = vmax.f32 %v1154, %v1277
  %v1426 = vmax.f32 %v1157, %v1279
  %v1427 = vmax.f32 %v1159, %v1282
  %v1428 = vmax.f32 %v1162, %v1284
  %v1429 = vmax.f32 %v1164, %v1287
  %v1430 = vmax.f32 %v1167, %v1289
  %v1431 = vmax.f32 %v1169, %v1292
  %v1432 = vmax.f32 %v1172, %v1294
  %v1433 = vmax.f32 %v1174, %v1297
  %v1434 = vmax.f32 %v1177, %v1299
  %v1435 = vmax.f32 %v1179, %v1302
  %v1436 = vmax.f32 %v1182, %v1304
  %v1437 = vmax.f32 %v1184, %v1307
  %v1438 = vmax.f32 %v1187, %v1309
  %v1439 = vmax.f32 %v1189, %v1312
  %v1440 = vmax.f32 %v1192, %v1314
  %v1441 = vmax.f32 %v1194, %v1317
  %v1442 = vmax.f32 %v1197, %v1319
  %v1443 = vmax.f32 %v1199, %v1322
  %v1444 = vmax.f32 %v1202, %v1324
  %v1445 = vmax.f32 %v1204, %v1327
  %v1446 = vmax.f32 %v1207, %v1329
  %v1447 = vmax.f32 %v1209, %v1332
  %v1448 = vmax.f32 %v1212, %v1334
  %v1449 = vmax.f32 %v1214, %v1337
  %v1450 = vmax.f32 %v1217, %v1339
  %v1451 = vmax.f32 %v1219, %v1342
  %v1452 = vmax.f32 %v1222, %v1344
  %v1453 = vmax.f32 %v1224, %v1347
  %v1454 = vmax.f32 %v1227, %v1349
  %v1455 = vmax.f32 %v1229, %v1352
  %v1456 = vmax.f32 %v1232, %v1354
  %v1457 = vmax.f32 %v1234, %v1357
  %v1458 = vmax.f32 %v1237, %v1359
  %v1459 = vmax.f32 %v1361, %v1410
  %v1460 = vmax.f32 %v1362, %v1411
  %v1461 = vmax.f32 %v1363, %v1412
  %v1462 = vmax.f32 %v1364, %v1413
  %v1463 = vmax.f32 %v1365, %v1414
  %v1464 = vmax.f32 %v1366, %v1415
  %v1465 = vmax.f32 %v1367, %v1416
  %v1466 = vmax.f32 %v1368, %v1417
  %v1467 = vmax.f32 %v1369, %v1418
  %v1468 = vmax.f32 %v1370, %v1419
  %v1469 = vmax.f32 %v1371, %v1420
  %v1470 = vmax.f32 %v1372, %v1421
  %v1471 = vmax.f32 %v1373, %v1422
  %v1472 = vmax.f32 %v1374, %v1423
  %v1473 = vmax.f32 %v1375, %v1424
  %v1474 = vmax.f32 %v1376, %v1425
  %v1475 = vmax.f32 %v1377, %v1426
  %v1476 = vmax.f32 %v1378, %v1427
  %v1477 = vmax.f32 %v1379, %v1428
  %v1478 = vmax.f32 %v1380, %v1429
  %v1479 = vmax.f32 %v1381, %v1430
  %v1480 = vmax.f32 %v1382, %v1431
  %v1481 = vmax.f32 %v1383, %v1432
  %v1482 = vmax.f32 %v1384, %v1433
  %v1483 = vmax.f32 %v1385, %v1434
  %v1484 = vmax.f32 %v1386, %v1435
  %v1485 = vmax.f32 %v1387, %v1436
  %v1486 = vmax.f32 %v1388, %v1437
  %v1487 = vmax.f32 %v1389, %v1438
  %v1488 = vmax.f32 %v1390, %v1439
  %v1489 = vmax.f32 %v1391, %v1440
  %v1490 = vmax.f32 %v1392, %v1441
  %v1491 = vmax.f32 %v1393, %v1442
  %v1492 = vmax.f32 %v1394, %v1443
  %v1493 = vmax.f32 %v1395, %v1444
  %v1494 = vmax.f32 %v1396, %v1445
  %v1495 = vmax.f32 %v1397, %v1446
  %v1496 = vmax.f32 %v1398, %v1447
  %v1497 = vmax.f32 %v1399, %v1448
  %v1498 = vmax.f32 %v1400, %v1449
  %v1499 = vmax.f32 %v1401, %v1450
  %v1500 = vmax.f32 %v1402, %v1451
  %v1501 = vmax.f32 %v1403, %v1452
  %v1502 = vmax.f32 %v1404, %v1453
  %v1503 = vmax.f32 %v1405, %v1454
  %v1504 = vmax.f32 %v1406, %v1455
  %v1505 = vmax.f32 %v1407, %v1456
  %v1506 = vmax.f32 %v1408, %v1457
  %v1507 = vmax.f32 %v1409, %v1458
  %v1508 = vld [vmem:[%s2] sm:$0x1]
  %v1510 = vperm.slane %v1508, 0
  %v1512 = vadd.f32 %v1459, %v1510
  %v1513 = vadd.f32 %v1460, %v1510
  %v1514 = vadd.f32 %v1461, %v1510
  %v1515 = vadd.f32 %v1462, %v1510
  %v1516 = vadd.f32 %v1463, %v1510
  %v1517 = vadd.f32 %v1464, %v1510
  %v1518 = vadd.f32 %v1465, %v1510
  %v1519 = vadd.f32 %v1466, %v1510
  %v1520 = vadd.f32 %v1467, %v1510
  %v1521 = vadd.f32 %v1468, %v1510
  %v1522 = vadd.f32 %v1469, %v1510
  %v1523 = vadd.f32 %v1470, %v1510
  %v1524 = vadd.f32 %v1471, %v1510
  %v1525 = vadd.f32 %v1472, %v1510
  %v1526 = vadd.f32 %v1473, %v1510
  %v1527 = vadd.f32 %v1474, %v1510
  %v1528 = vadd.f32 %v1475, %v1510
  %v1529 = vadd.f32 %v1476, %v1510
  %v1530 = vadd.f32 %v1477, %v1510
  %v1531 = vadd.f32 %v1478, %v1510
  %v1532 = vadd.f32 %v1479, %v1510
  %v1533 = vadd.f32 %v1480, %v1510
  %v1534 = vadd.f32 %v1481, %v1510
  %v1535 = vadd.f32 %v1482, %v1510
  %v1536 = vadd.f32 %v1483, %v1510
  %v1537 = vadd.f32 %v1484, %v1510
  %v1538 = vadd.f32 %v1485, %v1510
  %v1539 = vadd.f32 %v1486, %v1510
  %v1540 = vadd.f32 %v1487, %v1510
  %v1541 = vadd.f32 %v1488, %v1510
  %v1542 = vadd.f32 %v1489, %v1510
  %v1543 = vadd.f32 %v1490, %v1510
  %v1544 = vadd.f32 %v1491, %v1510
  %v1545 = vadd.f32 %v1492, %v1510
  %v1546 = vadd.f32 %v1493, %v1510
  %v1547 = vadd.f32 %v1494, %v1510
  %v1548 = vadd.f32 %v1495, %v1510
  %v1549 = vadd.f32 %v1496, %v1510
  %v1550 = vadd.f32 %v1497, %v1510
  %v1551 = vadd.f32 %v1498, %v1510
  %v1552 = vadd.f32 %v1499, %v1510
  %v1553 = vadd.f32 %v1500, %v1510
  %v1554 = vadd.f32 %v1501, %v1510
  %v1555 = vadd.f32 %v1502, %v1510
  %v1556 = vadd.f32 %v1503, %v1510
  %v1557 = vadd.f32 %v1504, %v1510
  %v1558 = vadd.f32 %v1505, %v1510
  %v1559 = vadd.f32 %v1506, %v1510
  %v1560 = vadd.f32 %v1507, %v1510
  %v1561 = vmax.f32 %v1512, 0.0
  %v1562 = vmax.f32 %v1513, 0.0
  %v1563 = vmax.f32 %v1514, 0.0
  %v1564 = vmax.f32 %v1515, 0.0
  %v1565 = vmax.f32 %v1516, 0.0
  %v1566 = vmax.f32 %v1517, 0.0
  %v1567 = vmax.f32 %v1518, 0.0
  %v1568 = vmax.f32 %v1519, 0.0
  %v1569 = vmax.f32 %v1520, 0.0
  %v1570 = vmax.f32 %v1521, 0.0
  %v1571 = vmax.f32 %v1522, 0.0
  %v1572 = vmax.f32 %v1523, 0.0
  %v1573 = vmax.f32 %v1524, 0.0
  %v1574 = vmax.f32 %v1525, 0.0
  %v1575 = vmax.f32 %v1526, 0.0
  %v1576 = vmax.f32 %v1527, 0.0
  %v1577 = vmax.f32 %v1528, 0.0
  %v1578 = vmax.f32 %v1529, 0.0
  %v1579 = vmax.f32 %v1530, 0.0
  %v1580 = vmax.f32 %v1531, 0.0
  %v1581 = vmax.f32 %v1532, 0.0
  %v1582 = vmax.f32 %v1533, 0.0
  %v1583 = vmax.f32 %v1534, 0.0
  %v1584 = vmax.f32 %v1535, 0.0
  %v1585 = vmax.f32 %v1536, 0.0
  %v1586 = vmax.f32 %v1537, 0.0
  %v1587 = vmax.f32 %v1538, 0.0
  %v1588 = vmax.f32 %v1539, 0.0
  %v1589 = vmax.f32 %v1540, 0.0
  %v1590 = vmax.f32 %v1541, 0.0
  %v1591 = vmax.f32 %v1542, 0.0
  %v1592 = vmax.f32 %v1543, 0.0
  %v1593 = vmax.f32 %v1544, 0.0
  %v1594 = vmax.f32 %v1545, 0.0
  %v1595 = vmax.f32 %v1546, 0.0
  %v1596 = vmax.f32 %v1547, 0.0
  %v1597 = vmax.f32 %v1548, 0.0
  %v1598 = vmax.f32 %v1549, 0.0
  %v1599 = vmax.f32 %v1550, 0.0
  %v1600 = vmax.f32 %v1551, 0.0
  %v1601 = vmax.f32 %v1552, 0.0
  %v1602 = vmax.f32 %v1553, 0.0
  %v1603 = vmax.f32 %v1554, 0.0
  %v1604 = vmax.f32 %v1555, 0.0
  %v1605 = vmax.f32 %v1556, 0.0
  %v1606 = vmax.f32 %v1557, 0.0
  %v1607 = vmax.f32 %v1558, 0.0
  %v1608 = vmax.f32 %v1559, 0.0
  %v1609 = vmax.f32 %v1560, 0.0
  %v1610 = vpack.c.bf16 %v1561, %v1561
  %v1611 = vpack.c.bf16 %v1562, %v1562
  %v1612 = vpack.c.bf16 %v1563, %v1563
  %v1613 = vpack.c.bf16 %v1564, %v1564
  %v1614 = vpack.c.bf16 %v1565, %v1565
  %v1615 = vpack.c.bf16 %v1566, %v1566
  %v1616 = vpack.c.bf16 %v1567, %v1567
  %v1617 = vpack.c.bf16 %v1568, %v1568
  %v1618 = vpack.c.bf16 %v1569, %v1569
  %v1619 = vpack.c.bf16 %v1570, %v1570
  %v1620 = vpack.c.bf16 %v1571, %v1571
  %v1621 = vpack.c.bf16 %v1572, %v1572
  %v1622 = vpack.c.bf16 %v1573, %v1573
  %v1623 = vpack.c.bf16 %v1574, %v1574
  %v1624 = vpack.c.bf16 %v1575, %v1575
  %v1625 = vpack.c.bf16 %v1576, %v1576
  %v1626 = vpack.c.bf16 %v1577, %v1577
  %v1627 = vpack.c.bf16 %v1578, %v1578
  %v1628 = vpack.c.bf16 %v1579, %v1579
  %v1629 = vpack.c.bf16 %v1580, %v1580
  %v1630 = vpack.c.bf16 %v1581, %v1581
  %v1631 = vpack.c.bf16 %v1582, %v1582
  %v1632 = vpack.c.bf16 %v1583, %v1583
  %v1633 = vpack.c.bf16 %v1584, %v1584
  %v1634 = vpack.c.bf16 %v1585, %v1585
  %v1635 = vpack.c.bf16 %v1586, %v1586
  %v1636 = vpack.c.bf16 %v1587, %v1587
  %v1637 = vpack.c.bf16 %v1588, %v1588
  %v1638 = vpack.c.bf16 %v1589, %v1589
  %v1639 = vpack.c.bf16 %v1590, %v1590
  %v1640 = vpack.c.bf16 %v1591, %v1591
  %v1641 = vpack.c.bf16 %v1592, %v1592
  %v1642 = vpack.c.bf16 %v1593, %v1593
  %v1643 = vpack.c.bf16 %v1594, %v1594
  %v1644 = vpack.c.bf16 %v1595, %v1595
  %v1645 = vpack.c.bf16 %v1596, %v1596
  %v1646 = vpack.c.bf16 %v1597, %v1597
  %v1647 = vpack.c.bf16 %v1598, %v1598
  %v1648 = vpack.c.bf16 %v1599, %v1599
  %v1649 = vpack.c.bf16 %v1600, %v1600
  %v1650 = vpack.c.bf16 %v1601, %v1601
  %v1651 = vpack.c.bf16 %v1602, %v1602
  %v1652 = vpack.c.bf16 %v1603, %v1603
  %v1653 = vpack.c.bf16 %v1604, %v1604
  %v1654 = vpack.c.bf16 %v1605, %v1605
  %v1655 = vpack.c.bf16 %v1606, %v1606
  %v1656 = vpack.c.bf16 %v1607, %v1607
  %v1657 = vpack.c.bf16 %v1608, %v1608
  %v1658 = vpack.c.bf16 %v1609, %v1609
  %1659 = vst [vmem:[%s3] sm:$0xf] %v1610
  %1660 = vst [vmem:[%s3 + $0x4] sm:$0xf] %v1611
  %1661 = vst [vmem:[%s3 + $0x8] sm:$0xf] %v1612
  %1662 = vst [vmem:[%s3 + $0xc] sm:$0xf] %v1613
  %1663 = vst [vmem:[%s3 + $0x10] sm:$0xf] %v1614
  %1664 = vst [vmem:[%s3 + $0x14] sm:$0xf] %v1615
  %1665 = vst [vmem:[%s3 + $0x18] sm:$0xf] %v1616
  %1666 = vst [vmem:[%s3 + $0x1c] sm:$0xf] %v1617
  %1667 = vst [vmem:[%s3 + $0x20] sm:$0xf] %v1618
  %1668 = vst [vmem:[%s3 + $0x24] sm:$0xf] %v1619
  %1669 = vst [vmem:[%s3 + $0x28] sm:$0xf] %v1620
  %1670 = vst [vmem:[%s3 + $0x2c] sm:$0xf] %v1621
  %1671 = vst [vmem:[%s3 + $0x30] sm:$0xf] %v1622
  %1672 = vst [vmem:[%s3 + $0x34] sm:$0xf] %v1623
  %1673 = vst [vmem:[%s3 + $0x38] sm:$0xf] %v1624
  %1674 = vst [vmem:[%s3 + $0x3c] sm:$0xf] %v1625
  %1675 = vst [vmem:[%s3 + $0x40] sm:$0xf] %v1626
  %1676 = vst [vmem:[%s3 + $0x44] sm:$0xf] %v1627
  %1677 = vst [vmem:[%s3 + $0x48] sm:$0xf] %v1628
  %1678 = vst [vmem:[%s3 + $0x4c] sm:$0xf] %v1629
  %1679 = vst [vmem:[%s3 + $0x50] sm:$0xf] %v1630
  %1680 = vst [vmem:[%s3 + $0x54] sm:$0xf] %v1631
  %1681 = vst [vmem:[%s3 + $0x58] sm:$0xf] %v1632
  %1682 = vst [vmem:[%s3 + $0x5c] sm:$0xf] %v1633
  %1683 = vst [vmem:[%s3 + $0x60] sm:$0xf] %v1634
  %1684 = vst [vmem:[%s3 + $0x64] sm:$0xf] %v1635
  %1685 = vst [vmem:[%s3 + $0x68] sm:$0xf] %v1636
  %1686 = vst [vmem:[%s3 + $0x6c] sm:$0xf] %v1637
  %1687 = vst [vmem:[%s3 + $0x70] sm:$0xf] %v1638
  %1688 = vst [vmem:[%s3 + $0x74] sm:$0xf] %v1639
  %1689 = vst [vmem:[%s3 + $0x78] sm:$0xf] %v1640
  %1690 = vst [vmem:[%s3 + $0x7c] sm:$0xf] %v1641
  %1691 = vst [vmem:[%s3 + $0x80] sm:$0xf] %v1642
  %1692 = vst [vmem:[%s3 + $0x84] sm:$0xf] %v1643
  %1693 = vst [vmem:[%s3 + $0x88] sm:$0xf] %v1644
  %1694 = vst [vmem:[%s3 + $0x8c] sm:$0xf] %v1645
  %1695 = vst [vmem:[%s3 + $0x90] sm:$0xf] %v1646
  %1696 = vst [vmem:[%s3 + $0x94] sm:$0xf] %v1647
  %1697 = vst [vmem:[%s3 + $0x98] sm:$0xf] %v1648
  %1698 = vst [vmem:[%s3 + $0x9c] sm:$0xf] %v1649
  %1699 = vst [vmem:[%s3 + $0xa0] sm:$0xf] %v1650
  %1700 = vst [vmem:[%s3 + $0xa4] sm:$0xf] %v1651
  %1701 = vst [vmem:[%s3 + $0xa8] sm:$0xf] %v1652
  %1702 = vst [vmem:[%s3 + $0xac] sm:$0xf] %v1653
  %1703 = vst [vmem:[%s3 + $0xb0] sm:$0xf] %v1654
  %1704 = vst [vmem:[%s3 + $0xb4] sm:$0xf] %v1655
  %1705 = vst [vmem:[%s3 + $0xb8] sm:$0xf] %v1656
  %1706 = vst [vmem:[%s3 + $0xbc] sm:$0xf] %v1657
  %1707 = vst [vmem:[%s3 + $0xc0] sm:$0xf] %v1658
  // Predicated region
  $region14: #{lenet_forward.3} parent=0 // pred_check
    _
  $region15: #{lenet_forward.3} parent=0 // pred_check_branch
    %1709 = sbr.rel (0) target = $region17
  $region16: #{lenet_forward.3} parent=0 // pred_region
    _
  $region17: #{lenet_forward.3} parent=0 // pred_fallthru
    _
  // Predicated region
  $region18: #{lenet_forward.3} parent=0 // pred_check
    _
  $region19: #{lenet_forward.3} parent=0 // pred_check_branch
    %1711 = sbr.rel (0) target = $region21
  $region20: #{lenet_forward.3} parent=0 // pred_region
    _
  $region21: #{lenet_forward.3} parent=0 // pred_fallthru
    _

// kernel: lenet_forward.4
$region0: #{lenet_forward.4}
  #allocation0 [shape = 'u32[]', space=smem, size = 0x4, offset = 0x4, fixed_abs, tag = 'smem constant byte address 0x4 - core index']
  #allocation1 [shape = 'u32[72,128]{1,0:T(1,128)}', space=vmem, size = 0x9000, scoped, tag = 'internal scratch']
  %s0 = inlined_call_operand.vmem [shape: bf16[224,256], index: 0, kind: input, shape index: {}]
  %s1 = inlined_call_operand.vmem [shape: bf16[256,128], index: 1, kind: input, shape index: {}]
  %s2 = inlined_call_operand.vmem [shape: f32[1,128], index: 2, kind: input, shape index: {}]
  %s3 = inlined_call_operand.vmem [shape: bf16[56,128], index: 3, kind: output, shape index: {}]
  %s4 = sld [smem:[#allocation0]]
  $region22: #{lenet_forward.4} parent=0
    _
  %s6 = ssub.s32 1, %s4
  %s7 = scalar_select 0, %s6, %s4
  // Predicated region
  $region2: #{lenet_forward.4} parent=0 // pred_check
    _
  $region3: #{lenet_forward.4} parent=0 // pred_check_branch
    %9 = sbr.rel (0) target = $region5
  $region4: #{lenet_forward.4} parent=0 // pred_region
    _
  $region5: #{lenet_forward.4} parent=0 // pred_fallthru
    _
  // Predicated region
  $region6: #{lenet_forward.4} parent=0 // pred_check
    _
  $region7: #{lenet_forward.4} parent=0 // pred_check_branch
    %11 = sbr.rel (0) target = $region9
  $region8: #{lenet_forward.4} parent=0 // pred_region
    _
  $region9: #{lenet_forward.4} parent=0 // pred_fallthru
    _
  // Predicated region
  $region10: #{lenet_forward.4} parent=0 // pred_check
    _
  $region11: #{lenet_forward.4} parent=0 // pred_check_branch
    %13 = sbr.rel (0) target = $region13
  $region12: #{lenet_forward.4} parent=0 // pred_region
    _
  $region13: #{lenet_forward.4} parent=0 // pred_fallthru
    _
  %v14 = vld [vmem:[%s0] sm:$0xff]
  %v15 = vld [vmem:[%s0 + $0x8] sm:$0xff]
  %v16 = vld [vmem:[%s0 + $0x10] sm:$0xff]
  %v17 = vld [vmem:[%s0 + $0x18] sm:$0xff]
  %v18 = vld [vmem:[%s0 + $0x20] sm:$0xff]
  %v19 = vld [vmem:[%s0 + $0x28] sm:$0xff]
  %v20 = vld [vmem:[%s0 + $0x30] sm:$0xff]
  %v21 = vld [vmem:[%s0 + $0x38] sm:$0xff]
  %v22 = vld [vmem:[%s0 + $0x40] sm:$0xff]
  %v23 = vld [vmem:[%s0 + $0x48] sm:$0xff]
  %v24 = vld [vmem:[%s0 + $0x50] sm:$0xff]
  %v25 = vld [vmem:[%s0 + $0x58] sm:$0xff]
  %v26 = vld [vmem:[%s0 + $0x60] sm:$0xff]
  %v27 = vld [vmem:[%s0 + $0x68] sm:$0xff]
  %v28 = vld [vmem:[%s0 + $0x70] sm:$0xff]
  %v29 = vld [vmem:[%s0 + $0x78] sm:$0xff]
  %v30 = vld [vmem:[%s0 + $0x80] sm:$0xff]
  %v31 = vld [vmem:[%s0 + $0x88] sm:$0xff]
  %v32 = vld [vmem:[%s0 + $0x90] sm:$0xff]
  %v33 = vld [vmem:[%s0 + $0x98] sm:$0xff]
  %v34 = vld [vmem:[%s0 + $0xa0] sm:$0xff]
  %v35 = vld [vmem:[%s0 + $0xa8] sm:$0xff]
  %v36 = vld [vmem:[%s0 + $0xb0] sm:$0xff]
  %v37 = vld [vmem:[%s0 + $0xb8] sm:$0xff]
  %v38 = vld [vmem:[%s0 + $0xc0] sm:$0xff]
  %v39 = vld [vmem:[%s0 + $0xc8] sm:$0xff]
  %v40 = vld [vmem:[%s0 + $0xd0] sm:$0xff]
  %v41 = vld [vmem:[%s0 + $0xd8] sm:$0xff]
  %v42 = vld [vmem:[%s1] sm:$0xf]
  %v43 = vld [vmem:[%s1 + $0x4] sm:$0xf]
  %v44 = vld [vmem:[%s1 + $0x8] sm:$0xf]
  %v45 = vld [vmem:[%s1 + $0xc] sm:$0xf]
  %v46 = vld [vmem:[%s1 + $0x10] sm:$0xf]
  %v47 = vld [vmem:[%s1 + $0x14] sm:$0xf]
  %v48 = vld [vmem:[%s1 + $0x18] sm:$0xf]
  %v49 = vld [vmem:[%s1 + $0x1c] sm:$0xf]
  %v50 = vld [vmem:[%s1 + $0x20] sm:$0xf]
  %v51 = vld [vmem:[%s1 + $0x24] sm:$0xf]
  %v52 = vld [vmem:[%s1 + $0x28] sm:$0xf]
  %v53 = vld [vmem:[%s1 + $0x2c] sm:$0xf]
  %v54 = vld [vmem:[%s1 + $0x30] sm:$0xf]
  %v55 = vld [vmem:[%s1 + $0x34] sm:$0xf]
  %v56 = vld [vmem:[%s1 + $0x38] sm:$0xf]
  %v57 = vld [vmem:[%s1 + $0x3c] sm:$0xf]
  %v58 = vld [vmem:[%s1 + $0x40] sm:$0xf]
  %v59 = vld [vmem:[%s1 + $0x44] sm:$0xf]
  %v60 = vld [vmem:[%s1 + $0x48] sm:$0xf]
  %v61 = vld [vmem:[%s1 + $0x4c] sm:$0xf]
  %v62 = vld [vmem:[%s1 + $0x50] sm:$0xf]
  %v63 = vld [vmem:[%s1 + $0x54] sm:$0xf]
  %v64 = vld [vmem:[%s1 + $0x58] sm:$0xf]
  %v65 = vld [vmem:[%s1 + $0x5c] sm:$0xf]
  %v66 = vld [vmem:[%s1 + $0x60] sm:$0xf]
  %v67 = vld [vmem:[%s1 + $0x64] sm:$0xf]
  %v68 = vld [vmem:[%s1 + $0x68] sm:$0xf]
  %v69 = vld [vmem:[%s1 + $0x6c] sm:$0xf]
  %v70 = vld [vmem:[%s1 + $0x70] sm:$0xf]
  %v71 = vld [vmem:[%s1 + $0x74] sm:$0xf]
  %v72 = vld [vmem:[%s1 + $0x78] sm:$0xf]
  %v73 = vld [vmem:[%s1 + $0x7c] sm:$0xf]
  %v102 = vunpack.c.l.b16 %v14
  %v103 = vunpack.c.h.b16 %v14
  %v104 = vunpack.c.l.b16 %v15
  %v105 = vunpack.c.h.b16 %v15
  %v106 = vunpack.c.l.b16 %v16
  %v107 = vunpack.c.h.b16 %v16
  %v108 = vunpack.c.l.b16 %v17
  %v109 = vunpack.c.h.b16 %v17
  %v110 = vunpack.c.l.b16 %v18
  %v111 = vunpack.c.h.b16 %v18
  %v112 = vunpack.c.l.b16 %v19
  %v113 = vunpack.c.h.b16 %v19
  %v114 = vunpack.c.l.b16 %v20
  %v115 = vunpack.c.h.b16 %v20
  %v116 = vunpack.c.l.b16 %v21
  %v117 = vunpack.c.h.b16 %v21
  %v118 = vunpack.c.l.b16 %v22
  %v119 = vunpack.c.h.b16 %v22
  %v120 = vunpack.c.l.b16 %v23
  %v121 = vunpack.c.h.b16 %v23
  %v122 = vunpack.c.l.b16 %v24
  %v123 = vunpack.c.h.b16 %v24
  %v124 = vunpack.c.l.b16 %v25
  %v125 = vunpack.c.h.b16 %v25
  %v126 = vunpack.c.l.b16 %v26
  %v127 = vunpack.c.h.b16 %v26
  %v128 = vunpack.c.l.b16 %v27
  %v129 = vunpack.c.h.b16 %v27
  %v130 = vunpack.c.l.b16 %v28
  %v131 = vunpack.c.h.b16 %v28
  %v132 = vunpack.c.l.b16 %v29
  %v133 = vunpack.c.h.b16 %v29
  %v134 = vunpack.c.l.b16 %v30
  %v135 = vunpack.c.h.b16 %v30
  %v136 = vunpack.c.l.b16 %v31
  %v137 = vunpack.c.h.b16 %v31
  %v138 = vunpack.c.l.b16 %v32
  %v139 = vunpack.c.h.b16 %v32
  %v140 = vunpack.c.l.b16 %v33
  %v141 = vunpack.c.h.b16 %v33
  %v142 = vunpack.c.l.b16 %v34
  %v143 = vunpack.c.h.b16 %v34
  %v144 = vunpack.c.l.b16 %v35
  %v145 = vunpack.c.h.b16 %v35
  %v146 = vunpack.c.l.b16 %v36
  %v147 = vunpack.c.h.b16 %v36
  %v148 = vunpack.c.l.b16 %v37
  %v149 = vunpack.c.h.b16 %v37
  %v150 = vunpack.c.l.b16 %v38
  %v151 = vunpack.c.h.b16 %v38
  %v152 = vunpack.c.l.b16 %v39
  %v153 = vunpack.c.h.b16 %v39
  %v154 = vunpack.c.l.b16 %v40
  %v155 = vunpack.c.h.b16 %v40
  %v156 = vunpack.c.l.b16 %v41
  %v157 = vunpack.c.h.b16 %v41
  %v158 = vpack.c.b16 %v104, %v102
  %v159 = vpack.c.b16 %v105, %v103
  %v160 = vpack.c.b16 %v108, %v106
  %v161 = vpack.c.b16 %v109, %v107
  %v162 = vpack.c.b16 %v112, %v110
  %v163 = vpack.c.b16 %v113, %v111
  %v164 = vpack.c.b16 %v116, %v114
  %v165 = vpack.c.b16 %v117, %v115
  %v166 = vpack.c.b16 %v120, %v118
  %v167 = vpack.c.b16 %v121, %v119
  %v168 = vpack.c.b16 %v124, %v122
  %v169 = vpack.c.b16 %v125, %v123
  %v170 = vpack.c.b16 %v128, %v126
  %v171 = vpack.c.b16 %v129, %v127
  %v172 = vpack.c.b16 %v132, %v130
  %v173 = vpack.c.b16 %v133, %v131
  %v174 = vpack.c.b16 %v136, %v134
  %v175 = vpack.c.b16 %v137, %v135
  %v176 = vpack.c.b16 %v140, %v138
  %v177 = vpack.c.b16 %v141, %v139
  %v178 = vpack.c.b16 %v144, %v142
  %v179 = vpack.c.b16 %v145, %v143
  %v180 = vpack.c.b16 %v148, %v146
  %v181 = vpack.c.b16 %v149, %v147
  %v182 = vpack.c.b16 %v152, %v150
  %v183 = vpack.c.b16 %v153, %v151
  %v184 = vpack.c.b16 %v156, %v154
  %v185 = vpack.c.b16 %v157, %v155
  %v246 = vunpack.c.l.b16 %v42
  %v247 = vunpack.c.l.b16 %v43
  %v248 = vunpack.c.l.b16 %v44
  %v249 = vunpack.c.l.b16 %v45
  %v250 = vunpack.c.l.b16 %v46
  %v251 = vunpack.c.l.b16 %v47
  %v252 = vunpack.c.l.b16 %v48
  %v253 = vunpack.c.l.b16 %v49
  %v254 = vunpack.c.l.b16 %v50
  %v255 = vunpack.c.l.b16 %v51
  %v256 = vunpack.c.l.b16 %v52
  %v257 = vunpack.c.l.b16 %v53
  %v258 = vunpack.c.l.b16 %v54
  %v259 = vunpack.c.l.b16 %v55
  %v260 = vunpack.c.l.b16 %v56
  %v261 = vunpack.c.l.b16 %v57
  %v262 = vunpack.c.l.b16 %v58
  %v263 = vunpack.c.l.b16 %v59
  %v264 = vunpack.c.l.b16 %v60
  %v265 = vunpack.c.l.b16 %v61
  %v266 = vunpack.c.l.b16 %v62
  %v267 = vunpack.c.l.b16 %v63
  %v268 = vunpack.c.l.b16 %v64
  %v269 = vunpack.c.l.b16 %v65
  %v270 = vunpack.c.l.b16 %v66
  %v271 = vunpack.c.l.b16 %v67
  %v272 = vunpack.c.l.b16 %v68
  %v273 = vunpack.c.l.b16 %v69
  %v274 = vunpack.c.l.b16 %v70
  %v275 = vunpack.c.l.b16 %v71
  %v276 = vunpack.c.l.b16 %v72
  %v277 = vunpack.c.l.b16 %v73
  %v278 = vpack.c.b16 %v247, %v246
  %v279 = vpack.c.b16 %v249, %v248
  %v280 = vpack.c.b16 %v251, %v250
  %v281 = vpack.c.b16 %v253, %v252
  %v282 = vpack.c.b16 %v255, %v254
  %v283 = vpack.c.b16 %v257, %v256
  %v284 = vpack.c.b16 %v259, %v258
  %v285 = vpack.c.b16 %v261, %v260
  %v286 = vpack.c.b16 %v263, %v262
  %v287 = vpack.c.b16 %v265, %v264
  %v288 = vpack.c.b16 %v267, %v266
  %v289 = vpack.c.b16 %v269, %v268
  %v290 = vpack.c.b16 %v271, %v270
  %v291 = vpack.c.b16 %v273, %v272
  %v292 = vpack.c.b16 %v275, %v274
  %v293 = vpack.c.b16 %v277, %v276
  %310 = vmatpush.bf16.msra.mxu0 %v285
  %311 = vmatpush.bf16.msra.mxu0 %v284
  %312 = vmatpush.bf16.msra.mxu0 %v283
  %313 = vmatpush.bf16.msra.mxu0 %v282
  %314 = vmatpush.bf16.msra.mxu0 %v281
  %315 = vmatpush.bf16.msra.mxu0 %v280
  %316 = vmatpush.bf16.msra.mxu0 %v279
  %317 = vmatpush.bf16.msra.mxu0 %v278
  %318 = vmatmul.bf16.gmra.mxu0 %v158
  %v319 = vpop.f32.mrf.mxu0
  %v320 = vadd.f32 0.0, %v319
  %v321 = vpop.f32.mrf.mxu0
  %v322 = vadd.f32 0.0, %v321
  %323 = vmatmul.bf16.gmra.mxu0 %v160
  %v324 = vpop.f32.mrf.mxu0
  %v325 = vadd.f32 0.0, %v324
  %v326 = vpop.f32.mrf.mxu0
  %v327 = vadd.f32 0.0, %v326
  %328 = vmatmul.bf16.gmra.mxu0 %v162
  %v329 = vpop.f32.mrf.mxu0
  %v330 = vadd.f32 0.0, %v329
  %v331 = vpop.f32.mrf.mxu0
  %v332 = vadd.f32 0.0, %v331
  %333 = vmatmul.bf16.gmra.mxu0 %v164
  %v334 = vpop.f32.mrf.mxu0
  %v335 = vadd.f32 0.0, %v334
  %v336 = vpop.f32.mrf.mxu0
  %v337 = vadd.f32 0.0, %v336
  %338 = vmatmul.bf16.gmra.mxu0 %v166
  %v339 = vpop.f32.mrf.mxu0
  %v340 = vadd.f32 0.0, %v339
  %v341 = vpop.f32.mrf.mxu0
  %v342 = vadd.f32 0.0, %v341
  %343 = vmatmul.bf16.gmra.mxu0 %v168
  %v344 = vpop.f32.mrf.mxu0
  %v345 = vadd.f32 0.0, %v344
  %v346 = vpop.f32.mrf.mxu0
  %v347 = vadd.f32 0.0, %v346
  %348 = vmatmul.bf16.gmra.mxu0 %v170
  %v349 = vpop.f32.mrf.mxu0
  %v350 = vadd.f32 0.0, %v349
  %v351 = vpop.f32.mrf.mxu0
  %v352 = vadd.f32 0.0, %v351
  %353 = vmatmul.bf16.gmra.mxu0 %v172
  %v354 = vpop.f32.mrf.mxu0
  %v355 = vadd.f32 0.0, %v354
  %v356 = vpop.f32.mrf.mxu0
  %v357 = vadd.f32 0.0, %v356
  %358 = vmatmul.bf16.gmra.mxu0 %v174
  %v359 = vpop.f32.mrf.mxu0
  %v360 = vadd.f32 0.0, %v359
  %v361 = vpop.f32.mrf.mxu0
  %v362 = vadd.f32 0.0, %v361
  %363 = vmatmul.bf16.gmra.mxu0 %v176
  %v364 = vpop.f32.mrf.mxu0
  %v365 = vadd.f32 0.0, %v364
  %v366 = vpop.f32.mrf.mxu0
  %v367 = vadd.f32 0.0, %v366
  %368 = vmatmul.bf16.gmra.mxu0 %v178
  %v369 = vpop.f32.mrf.mxu0
  %v370 = vadd.f32 0.0, %v369
  %v371 = vpop.f32.mrf.mxu0
  %v372 = vadd.f32 0.0, %v371
  %373 = vmatmul.bf16.gmra.mxu0 %v180
  %v374 = vpop.f32.mrf.mxu0
  %v375 = vadd.f32 0.0, %v374
  %v376 = vpop.f32.mrf.mxu0
  %v377 = vadd.f32 0.0, %v376
  %378 = vmatmul.bf16.gmra.mxu0 %v182
  %v379 = vpop.f32.mrf.mxu0
  %v380 = vadd.f32 0.0, %v379
  %v381 = vpop.f32.mrf.mxu0
  %v382 = vadd.f32 0.0, %v381
  %383 = vmatmul.bf16.gmra.mxu0 %v184
  %v384 = vpop.f32.mrf.mxu0
  %v385 = vadd.f32 0.0, %v384
  %v386 = vpop.f32.mrf.mxu0
  %v387 = vadd.f32 0.0, %v386
  %388 = vdwg.mxu0
  %389 = vmatpush.bf16.msra.mxu0 %v293
  %390 = vmatpush.bf16.msra.mxu0 %v292
  %391 = vmatpush.bf16.msra.mxu0 %v291
  %392 = vmatpush.bf16.msra.mxu0 %v290
  %393 = vmatpush.bf16.msra.mxu0 %v289
  %394 = vmatpush.bf16.msra.mxu0 %v288
  %395 = vmatpush.bf16.msra.mxu0 %v287
  %396 = vmatpush.bf16.msra.mxu0 %v286
  %397 = vmatmul.bf16.gmra.mxu0 %v159
  %v398 = vpop.f32.mrf.mxu0
  %v399 = vadd.f32 %v320, %v398
  %v400 = vpop.f32.mrf.mxu0
  %v401 = vadd.f32 %v322, %v400
  %402 = vmatmul.bf16.gmra.mxu0 %v161
  %v403 = vpop.f32.mrf.mxu0
  %v404 = vadd.f32 %v325, %v403
  %v405 = vpop.f32.mrf.mxu0
  %v406 = vadd.f32 %v327, %v405
  %407 = vmatmul.bf16.gmra.mxu0 %v163
  %v408 = vpop.f32.mrf.mxu0
  %v409 = vadd.f32 %v330, %v408
  %v410 = vpop.f32.mrf.mxu0
  %v411 = vadd.f32 %v332, %v410
  %412 = vmatmul.bf16.gmra.mxu0 %v165
  %v413 = vpop.f32.mrf.mxu0
  %v414 = vadd.f32 %v335, %v413
  %v415 = vpop.f32.mrf.mxu0
  %v416 = vadd.f32 %v337, %v415
  %417 = vmatmul.bf16.gmra.mxu0 %v167
  %v418 = vpop.f32.mrf.mxu0
  %v419 = vadd.f32 %v340, %v418
  %v420 = vpop.f32.mrf.mxu0
  %v421 = vadd.f32 %v342, %v420
  %422 = vmatmul.bf16.gmra.mxu0 %v169
  %v423 = vpop.f32.mrf.mxu0
  %v424 = vadd.f32 %v345, %v423
  %v425 = vpop.f32.mrf.mxu0
  %v426 = vadd.f32 %v347, %v425
  %427 = vmatmul.bf16.gmra.mxu0 %v171
  %v428 = vpop.f32.mrf.mxu0
  %v429 = vadd.f32 %v350, %v428
  %v430 = vpop.f32.mrf.mxu0
  %v431 = vadd.f32 %v352, %v430
  %432 = vmatmul.bf16.gmra.mxu0 %v173
  %v433 = vpop.f32.mrf.mxu0
  %v434 = vadd.f32 %v355, %v433
  %v435 = vpop.f32.mrf.mxu0
  %v436 = vadd.f32 %v357, %v435
  %437 = vmatmul.bf16.gmra.mxu0 %v175
  %v438 = vpop.f32.mrf.mxu0
  %v439 = vadd.f32 %v360, %v438
  %v440 = vpop.f32.mrf.mxu0
  %v441 = vadd.f32 %v362, %v440
  %442 = vmatmul.bf16.gmra.mxu0 %v177
  %v443 = vpop.f32.mrf.mxu0
  %v444 = vadd.f32 %v365, %v443
  %v445 = vpop.f32.mrf.mxu0
  %v446 = vadd.f32 %v367, %v445
  %447 = vmatmul.bf16.gmra.mxu0 %v179
  %v448 = vpop.f32.mrf.mxu0
  %v449 = vadd.f32 %v370, %v448
  %v450 = vpop.f32.mrf.mxu0
  %v451 = vadd.f32 %v372, %v450
  %452 = vmatmul.bf16.gmra.mxu0 %v181
  %v453 = vpop.f32.mrf.mxu0
  %v454 = vadd.f32 %v375, %v453
  %v455 = vpop.f32.mrf.mxu0
  %v456 = vadd.f32 %v377, %v455
  %457 = vmatmul.bf16.gmra.mxu0 %v183
  %v458 = vpop.f32.mrf.mxu0
  %v459 = vadd.f32 %v380, %v458
  %v460 = vpop.f32.mrf.mxu0
  %v461 = vadd.f32 %v382, %v460
  %462 = vmatmul.bf16.gmra.mxu0 %v185
  %v463 = vpop.f32.mrf.mxu0
  %v464 = vadd.f32 %v385, %v463
  %v465 = vpop.f32.mrf.mxu0
  %v466 = vadd.f32 %v387, %v465
  %467 = vdwg.mxu0
  %v468 = vmax.f32 %v399, %v416
  %v469 = vmax.f32 %v401, %v419
  %v470 = vmax.f32 %v404, %v421
  %v471 = vmax.f32 %v406, %v424
  %v472 = vmax.f32 %v409, %v426
  %v473 = vmax.f32 %v411, %v429
  %v474 = vmax.f32 %v414, %v431
  %v475 = vmax.f32 %v434, %v451
  %v476 = vmax.f32 %v436, %v454
  %v477 = vmax.f32 %v439, %v456
  %v478 = vmax.f32 %v441, %v459
  %v479 = vmax.f32 %v444, %v461
  %v480 = vmax.f32 %v446, %v464
  %v481 = vmax.f32 %v449, %v466
  %v482 = vmax.f32 %v468, %v475
  %v483 = vmax.f32 %v469, %v476
  %v484 = vmax.f32 %v470, %v477
  %v485 = vmax.f32 %v471, %v478
  %v486 = vmax.f32 %v472, %v479
  %v487 = vmax.f32 %v473, %v480
  %v488 = vmax.f32 %v474, %v481
  %v489 = vld [vmem:[%s2] sm:$0x1]
  %v491 = vperm.slane %v489, 0
  %v493 = vadd.f32 %v482, %v491
  %v494 = vadd.f32 %v483, %v491
  %v495 = vadd.f32 %v484, %v491
  %v496 = vadd.f32 %v485, %v491
  %v497 = vadd.f32 %v486, %v491
  %v498 = vadd.f32 %v487, %v491
  %v499 = vadd.f32 %v488, %v491
  %v500 = vmax.f32 %v493, 0.0
  %v501 = vmax.f32 %v494, 0.0
  %v502 = vmax.f32 %v495, 0.0
  %v503 = vmax.f32 %v496, 0.0
  %v504 = vmax.f32 %v497, 0.0
  %v505 = vmax.f32 %v498, 0.0
  %v506 = vmax.f32 %v499, 0.0
  %v507 = vpack.c.bf16 %v500, %v500
  %v508 = vpack.c.bf16 %v501, %v501
  %v509 = vpack.c.bf16 %v502, %v502
  %v510 = vpack.c.bf16 %v503, %v503
  %v511 = vpack.c.bf16 %v504, %v504
  %v512 = vpack.c.bf16 %v505, %v505
  %v513 = vpack.c.bf16 %v506, %v506
  %514 = vst [vmem:[%s3] sm:$0xf] %v507
  %515 = vst [vmem:[%s3 + $0x4] sm:$0xf] %v508
  %516 = vst [vmem:[%s3 + $0x8] sm:$0xf] %v509
  %517 = vst [vmem:[%s3 + $0xc] sm:$0xf] %v510
  %518 = vst [vmem:[%s3 + $0x10] sm:$0xf] %v511
  %519 = vst [vmem:[%s3 + $0x14] sm:$0xf] %v512
  %520 = vst [vmem:[%s3 + $0x18] sm:$0xf] %v513
  // Predicated region
  $region14: #{lenet_forward.4} parent=0 // pred_check
    _
  $region15: #{lenet_forward.4} parent=0 // pred_check_branch
    %522 = sbr.rel (0) target = $region17
  $region16: #{lenet_forward.4} parent=0 // pred_region
    _
  $region17: #{lenet_forward.4} parent=0 // pred_fallthru
    _
  // Predicated region
  $region18: #{lenet_forward.4} parent=0 // pred_check
    _
  $region19: #{lenet_forward.4} parent=0 // pred_check_branch
    %524 = sbr.rel (0) target = $region21
  $region20: #{lenet_forward.4} parent=0 // pred_region
    _
  $region21: #{lenet_forward.4} parent=0 // pred_fallthru
    _

// kernel: lenet_forward.5
$region0: #{lenet_forward.5}
  #allocation0 [shape = 'u32[]', space=smem, size = 0x4, offset = 0x4, fixed_abs, tag = 'smem constant byte address 0x4 - core index']
  #allocation1 [shape = 'u32[72,128]{1,0:T(1,128)}', space=vmem, size = 0x9000, scoped, tag = 'internal scratch']
  %s0 = inlined_call_operand.vmem [shape: bf16[8,512], index: 0, kind: input, shape index: {}]
  %s1 = inlined_call_operand.vmem [shape: bf16[512,256], index: 1, kind: input, shape index: {}]
  %s2 = inlined_call_operand.vmem [shape: f32[1,256], index: 2, kind: input, shape index: {}]
  %s3 = inlined_call_operand.vmem [shape: bf16[256,128], index: 3, kind: input, shape index: {}]
  %s4 = inlined_call_operand.vmem [shape: f32[1,128], index: 4, kind: input, shape index: {}]
  %s5 = inlined_call_operand.vmem [shape: bf16[128,128], index: 5, kind: input, shape index: {}]
  %s6 = inlined_call_operand.vmem [shape: f32[1,128], index: 6, kind: input, shape index: {}]
  %s7 = inlined_call_operand.vmem [shape: f32[8,128], index: 7, kind: output, shape index: {}]
  %s8 = sld [smem:[#allocation0]]
  $region38: #{lenet_forward.5} parent=0
    _
  %s10 = ssub.s32 1, %s8
  %s11 = scalar_select 0, %s10, %s8
  // Predicated region
  $region2: #{lenet_forward.5} parent=0 // pred_check
    _
  $region3: #{lenet_forward.5} parent=0 // pred_check_branch
    %13 = sbr.rel (0) target = $region5
  $region4: #{lenet_forward.5} parent=0 // pred_region
    _
  $region5: #{lenet_forward.5} parent=0 // pred_fallthru
    _
  // Predicated region
  $region6: #{lenet_forward.5} parent=0 // pred_check
    _
  $region7: #{lenet_forward.5} parent=0 // pred_check_branch
    %15 = sbr.rel (0) target = $region9
  $region8: #{lenet_forward.5} parent=0 // pred_region
    _
  $region9: #{lenet_forward.5} parent=0 // pred_fallthru
    _
  // Predicated region
  $region10: #{lenet_forward.5} parent=0 // pred_check
    _
  $region11: #{lenet_forward.5} parent=0 // pred_check_branch
    %17 = sbr.rel (0) target = $region13
  $region12: #{lenet_forward.5} parent=0 // pred_region
    _
  $region13: #{lenet_forward.5} parent=0 // pred_fallthru
    _
  // Predicated region
  $region14: #{lenet_forward.5} parent=0 // pred_check
    _
  $region15: #{lenet_forward.5} parent=0 // pred_check_branch
    %19 = sbr.rel (0) target = $region17
  $region16: #{lenet_forward.5} parent=0 // pred_region
    _
  $region17: #{lenet_forward.5} parent=0 // pred_fallthru
    _
  // Predicated region
  $region18: #{lenet_forward.5} parent=0 // pred_check
    _
  $region19: #{lenet_forward.5} parent=0 // pred_check_branch
    %21 = sbr.rel (0) target = $region21
  $region20: #{lenet_forward.5} parent=0 // pred_region
    _
  $region21: #{lenet_forward.5} parent=0 // pred_fallthru
    _
  // Predicated region
  $region22: #{lenet_forward.5} parent=0 // pred_check
    _
  $region23: #{lenet_forward.5} parent=0 // pred_check_branch
    %23 = sbr.rel (0) target = $region25
  $region24: #{lenet_forward.5} parent=0 // pred_region
    _
  $region25: #{lenet_forward.5} parent=0 // pred_fallthru
    _
  // Predicated region
  $region26: #{lenet_forward.5} parent=0 // pred_check
    _
  $region27: #{lenet_forward.5} parent=0 // pred_check_branch
    %25 = sbr.rel (0) target = $region29
  $region28: #{lenet_forward.5} parent=0 // pred_region
    _
  $region29: #{lenet_forward.5} parent=0 // pred_fallthru
    _
  %v26 = vld [vmem:[%s0] sm:$0xff]
  %v27 = vld [vmem:[%s0 + $0x8] sm:$0xff]
  %v28 = vld [vmem:[%s1] sm:$0xff]
  %v29 = vld [vmem:[%s1 + $0x8] sm:$0xff]
  %v30 = vld [vmem:[%s1 + $0x10] sm:$0xff]
  %v31 = vld [vmem:[%s1 + $0x18] sm:$0xff]
  %v32 = vld [vmem:[%s1 + $0x20] sm:$0xff]
  %v33 = vld [vmem:[%s1 + $0x28] sm:$0xff]
  %v34 = vld [vmem:[%s1 + $0x30] sm:$0xff]
  %v35 = vld [vmem:[%s1 + $0x38] sm:$0xff]
  %v36 = vld [vmem:[%s1 + $0x40] sm:$0xff]
  %v37 = vld [vmem:[%s1 + $0x48] sm:$0xff]
  %v38 = vld [vmem:[%s1 + $0x50] sm:$0xff]
  %v39 = vld [vmem:[%s1 + $0x58] sm:$0xff]
  %v40 = vld [vmem:[%s1 + $0x60] sm:$0xff]
  %v41 = vld [vmem:[%s1 + $0x68] sm:$0xff]
  %v42 = vld [vmem:[%s1 + $0x70] sm:$0xff]
  %v43 = vld [vmem:[%s1 + $0x78] sm:$0xff]
  %v44 = vld [vmem:[%s1 + $0x80] sm:$0xff]
  %v45 = vld [vmem:[%s1 + $0x88] sm:$0xff]
  %v46 = vld [vmem:[%s1 + $0x90] sm:$0xff]
  %v47 = vld [vmem:[%s1 + $0x98] sm:$0xff]
  %v48 = vld [vmem:[%s1 + $0xa0] sm:$0xff]
  %v49 = vld [vmem:[%s1 + $0xa8] sm:$0xff]
  %v50 = vld [vmem:[%s1 + $0xb0] sm:$0xff]
  %v51 = vld [vmem:[%s1 + $0xb8] sm:$0xff]
  %v52 = vld [vmem:[%s1 + $0xc0] sm:$0xff]
  %v53 = vld [vmem:[%s1 + $0xc8] sm:$0xff]
  %v54 = vld [vmem:[%s1 + $0xd0] sm:$0xff]
  %v55 = vld [vmem:[%s1 + $0xd8] sm:$0xff]
  %v56 = vld [vmem:[%s1 + $0xe0] sm:$0xff]
  %v57 = vld [vmem:[%s1 + $0xe8] sm:$0xff]
  %v58 = vld [vmem:[%s1 + $0xf0] sm:$0xff]
  %v59 = vld [vmem:[%s1 + $0xf8] sm:$0xff]
  %v60 = vld [vmem:[%s1 + $0x100] sm:$0xff]
  %v61 = vld [vmem:[%s1 + $0x108] sm:$0xff]
  %v62 = vld [vmem:[%s1 + $0x110] sm:$0xff]
  %v63 = vld [vmem:[%s1 + $0x118] sm:$0xff]
  %v64 = vld [vmem:[%s1 + $0x120] sm:$0xff]
  %v65 = vld [vmem:[%s1 + $0x128] sm:$0xff]
  %v66 = vld [vmem:[%s1 + $0x130] sm:$0xff]
  %v67 = vld [vmem:[%s1 + $0x138] sm:$0xff]
  %v68 = vld [vmem:[%s1 + $0x140] sm:$0xff]
  %v69 = vld [vmem:[%s1 + $0x148] sm:$0xff]
  %v70 = vld [vmem:[%s1 + $0x150] sm:$0xff]
  %v71 = vld [vmem:[%s1 + $0x158] sm:$0xff]
  %v72 = vld [vmem:[%s1 + $0x160] sm:$0xff]
  %v73 = vld [vmem:[%s1 + $0x168] sm:$0xff]
  %v74 = vld [vmem:[%s1 + $0x170] sm:$0xff]
  %v75 = vld [vmem:[%s1 + $0x178] sm:$0xff]
  %v76 = vld [vmem:[%s1 + $0x180] sm:$0xff]
  %v77 = vld [vmem:[%s1 + $0x188] sm:$0xff]
  %v78 = vld [vmem:[%s1 + $0x190] sm:$0xff]
  %v79 = vld [vmem:[%s1 + $0x198] sm:$0xff]
  %v80 = vld [vmem:[%s1 + $0x1a0] sm:$0xff]
  %v81 = vld [vmem:[%s1 + $0x1a8] sm:$0xff]
  %v82 = vld [vmem:[%s1 + $0x1b0] sm:$0xff]
  %v83 = vld [vmem:[%s1 + $0x1b8] sm:$0xff]
  %v84 = vld [vmem:[%s1 + $0x1c0] sm:$0xff]
  %v85 = vld [vmem:[%s1 + $0x1c8] sm:$0xff]
  %v86 = vld [vmem:[%s1 + $0x1d0] sm:$0xff]
  %v87 = vld [vmem:[%s1 + $0x1d8] sm:$0xff]
  %v88 = vld [vmem:[%s1 + $0x1e0] sm:$0xff]
  %v89 = vld [vmem:[%s1 + $0x1e8] sm:$0xff]
  %v90 = vld [vmem:[%s1 + $0x1f0] sm:$0xff]
  %v91 = vld [vmem:[%s1 + $0x1f8] sm:$0xff]
  %v92 = vld [vmem:[%s2] sm:$0x3]
  %v94 = vperm.slane %v92, 0
  %v95 = vperm.slane %v92, 1
  %v100 = vunpack.c.l.b16 %v26
  %v101 = vunpack.c.h.b16 %v26
  %v102 = vunpack.c.l.b16 %v27
  %v103 = vunpack.c.h.b16 %v27
  %v104 = vpack.c.b16 %v100, %v100
  %v105 = vpack.c.b16 %v101, %v101
  %v106 = vpack.c.b16 %v102, %v102
  %v107 = vpack.c.b16 %v103, %v103
  %v176 = vunpack.c.l.b16 %v28
  %v177 = vunpack.c.h.b16 %v28
  %v178 = vunpack.c.l.b16 %v29
  %v179 = vunpack.c.h.b16 %v29
  %v180 = vunpack.c.l.b16 %v30
  %v181 = vunpack.c.h.b16 %v30
  %v182 = vunpack.c.l.b16 %v31
  %v183 = vunpack.c.h.b16 %v31
  %v184 = vunpack.c.l.b16 %v32
  %v185 = vunpack.c.h.b16 %v32
  %v186 = vunpack.c.l.b16 %v33
  %v187 = vunpack.c.h.b16 %v33
  %v188 = vunpack.c.l.b16 %v34
  %v189 = vunpack.c.h.b16 %v34
  %v190 = vunpack.c.l.b16 %v35
  %v191 = vunpack.c.h.b16 %v35
  %v192 = vunpack.c.l.b16 %v36
  %v193 = vunpack.c.h.b16 %v36
  %v194 = vunpack.c.l.b16 %v37
  %v195 = vunpack.c.h.b16 %v37
  %v196 = vunpack.c.l.b16 %v38
  %v197 = vunpack.c.h.b16 %v38
  %v198 = vunpack.c.l.b16 %v39
  %v199 = vunpack.c.h.b16 %v39
  %v200 = vunpack.c.l.b16 %v40
  %v201 = vunpack.c.h.b16 %v40
  %v202 = vunpack.c.l.b16 %v41
  %v203 = vunpack.c.h.b16 %v41
  %v204 = vunpack.c.l.b16 %v42
  %v205 = vunpack.c.h.b16 %v42
  %v206 = vunpack.c.l.b16 %v43
  %v207 = vunpack.c.h.b16 %v43
  %v208 = vunpack.c.l.b16 %v44
  %v209 = vunpack.c.h.b16 %v44
  %v210 = vunpack.c.l.b16 %v45
  %v211 = vunpack.c.h.b16 %v45
  %v212 = vunpack.c.l.b16 %v46
  %v213 = vunpack.c.h.b16 %v46
  %v214 = vunpack.c.l.b16 %v47
  %v215 = vunpack.c.h.b16 %v47
  %v216 = vunpack.c.l.b16 %v48
  %v217 = vunpack.c.h.b16 %v48
  %v218 = vunpack.c.l.b16 %v49
  %v219 = vunpack.c.h.b16 %v49
  %v220 = vunpack.c.l.b16 %v50
  %v221 = vunpack.c.h.b16 %v50
  %v222 = vunpack.c.l.b16 %v51
  %v223 = vunpack.c.h.b16 %v51
  %v224 = vunpack.c.l.b16 %v52
  %v225 = vunpack.c.h.b16 %v52
  %v226 = vunpack.c.l.b16 %v53
  %v227 = vunpack.c.h.b16 %v53
  %v228 = vunpack.c.l.b16 %v54
  %v229 = vunpack.c.h.b16 %v54
  %v230 = vunpack.c.l.b16 %v55
  %v231 = vunpack.c.h.b16 %v55
  %v232 = vunpack.c.l.b16 %v56
  %v233 = vunpack.c.h.b16 %v56
  %v234 = vunpack.c.l.b16 %v57
  %v235 = vunpack.c.h.b16 %v57
  %v236 = vunpack.c.l.b16 %v58
  %v237 = vunpack.c.h.b16 %v58
  %v238 = vunpack.c.l.b16 %v59
  %v239 = vunpack.c.h.b16 %v59
  %v240 = vunpack.c.l.b16 %v60
  %v241 = vunpack.c.h.b16 %v60
  %v242 = vunpack.c.l.b16 %v61
  %v243 = vunpack.c.h.b16 %v61
  %v244 = vunpack.c.l.b16 %v62
  %v245 = vunpack.c.h.b16 %v62
  %v246 = vunpack.c.l.b16 %v63
  %v247 = vunpack.c.h.b16 %v63
  %v248 = vunpack.c.l.b16 %v64
  %v249 = vunpack.c.h.b16 %v64
  %v250 = vunpack.c.l.b16 %v65
  %v251 = vunpack.c.h.b16 %v65
  %v252 = vunpack.c.l.b16 %v66
  %v253 = vunpack.c.h.b16 %v66
  %v254 = vunpack.c.l.b16 %v67
  %v255 = vunpack.c.h.b16 %v67
  %v256 = vunpack.c.l.b16 %v68
  %v257 = vunpack.c.h.b16 %v68
  %v258 = vunpack.c.l.b16 %v69
  %v259 = vunpack.c.h.b16 %v69
  %v260 = vunpack.c.l.b16 %v70
  %v261 = vunpack.c.h.b16 %v70
  %v262 = vunpack.c.l.b16 %v71
  %v263 = vunpack.c.h.b16 %v71
  %v264 = vunpack.c.l.b16 %v72
  %v265 = vunpack.c.h.b16 %v72
  %v266 = vunpack.c.l.b16 %v73
  %v267 = vunpack.c.h.b16 %v73
  %v268 = vunpack.c.l.b16 %v74
  %v269 = vunpack.c.h.b16 %v74
  %v270 = vunpack.c.l.b16 %v75
  %v271 = vunpack.c.h.b16 %v75
  %v272 = vunpack.c.l.b16 %v76
  %v273 = vunpack.c.h.b16 %v76
  %v274 = vunpack.c.l.b16 %v77
  %v275 = vunpack.c.h.b16 %v77
  %v276 = vunpack.c.l.b16 %v78
  %v277 = vunpack.c.h.b16 %v78
  %v278 = vunpack.c.l.b16 %v79
  %v279 = vunpack.c.h.b16 %v79
  %v280 = vunpack.c.l.b16 %v80
  %v281 = vunpack.c.h.b16 %v80
  %v282 = vunpack.c.l.b16 %v81
  %v283 = vunpack.c.h.b16 %v81
  %v284 = vunpack.c.l.b16 %v82
  %v285 = vunpack.c.h.b16 %v82
  %v286 = vunpack.c.l.b16 %v83
  %v287 = vunpack.c.h.b16 %v83
  %v288 = vunpack.c.l.b16 %v84
  %v289 = vunpack.c.h.b16 %v84
  %v290 = vunpack.c.l.b16 %v85
  %v291 = vunpack.c.h.b16 %v85
  %v292 = vunpack.c.l.b16 %v86
  %v293 = vunpack.c.h.b16 %v86
  %v294 = vunpack.c.l.b16 %v87
  %v295 = vunpack.c.h.b16 %v87
  %v296 = vunpack.c.l.b16 %v88
  %v297 = vunpack.c.h.b16 %v88
  %v298 = vunpack.c.l.b16 %v89
  %v299 = vunpack.c.h.b16 %v89
  %v300 = vunpack.c.l.b16 %v90
  %v301 = vunpack.c.h.b16 %v90
  %v302 = vunpack.c.l.b16 %v91
  %v303 = vunpack.c.h.b16 %v91
  %v304 = vpack.c.b16 %v178, %v176
  %v305 = vpack.c.b16 %v179, %v177
  %v306 = vpack.c.b16 %v182, %v180
  %v307 = vpack.c.b16 %v183, %v181
  %v308 = vpack.c.b16 %v186, %v184
  %v309 = vpack.c.b16 %v187, %v185
  %v310 = vpack.c.b16 %v190, %v188
  %v311 = vpack.c.b16 %v191, %v189
  %v312 = vpack.c.b16 %v194, %v192
  %v313 = vpack.c.b16 %v195, %v193
  %v314 = vpack.c.b16 %v198, %v196
  %v315 = vpack.c.b16 %v199, %v197
  %v316 = vpack.c.b16 %v202, %v200
  %v317 = vpack.c.b16 %v203, %v201
  %v318 = vpack.c.b16 %v206, %v204
  %v319 = vpack.c.b16 %v207, %v205
  %v320 = vpack.c.b16 %v210, %v208
  %v321 = vpack.c.b16 %v211, %v209
  %v322 = vpack.c.b16 %v214, %v212
  %v323 = vpack.c.b16 %v215, %v213
  %v324 = vpack.c.b16 %v218, %v216
  %v325 = vpack.c.b16 %v219, %v217
  %v326 = vpack.c.b16 %v222, %v220
  %v327 = vpack.c.b16 %v223, %v221
  %v328 = vpack.c.b16 %v226, %v224
  %v329 = vpack.c.b16 %v227, %v225
  %v330 = vpack.c.b16 %v230, %v228
  %v331 = vpack.c.b16 %v231, %v229
  %v332 = vpack.c.b16 %v234, %v232
  %v333 = vpack.c.b16 %v235, %v233
  %v334 = vpack.c.b16 %v238, %v236
  %v335 = vpack.c.b16 %v239, %v237
  %v336 = vpack.c.b16 %v242, %v240
  %v337 = vpack.c.b16 %v243, %v241
  %v338 = vpack.c.b16 %v246, %v244
  %v339 = vpack.c.b16 %v247, %v245
  %v340 = vpack.c.b16 %v250, %v248
  %v341 = vpack.c.b16 %v251, %v249
  %v342 = vpack.c.b16 %v254, %v252
  %v343 = vpack.c.b16 %v255, %v253
  %v344 = vpack.c.b16 %v258, %v256
  %v345 = vpack.c.b16 %v259, %v257
  %v346 = vpack.c.b16 %v262, %v260
  %v347 = vpack.c.b16 %v263, %v261
  %v348 = vpack.c.b16 %v266, %v264
  %v349 = vpack.c.b16 %v267, %v265
  %v350 = vpack.c.b16 %v270, %v268
  %v351 = vpack.c.b16 %v271, %v269
  %v352 = vpack.c.b16 %v274, %v272
  %v353 = vpack.c.b16 %v275, %v273
  %v354 = vpack.c.b16 %v278, %v276
  %v355 = vpack.c.b16 %v279, %v277
  %v356 = vpack.c.b16 %v282, %v280
  %v357 = vpack.c.b16 %v283, %v281
  %v358 = vpack.c.b16 %v286, %v284
  %v359 = vpack.c.b16 %v287, %v285
  %v360 = vpack.c.b16 %v290, %v288
  %v361 = vpack.c.b16 %v291, %v289
  %v362 = vpack.c.b16 %v294, %v292
  %v363 = vpack.c.b16 %v295, %v293
  %v364 = vpack.c.b16 %v298, %v296
  %v365 = vpack.c.b16 %v299, %v297
  %v366 = vpack.c.b16 %v302, %v300
  %v367 = vpack.c.b16 %v303, %v301
  %432 = vmatpush.bf16.msra.mxu0 %v318
  %433 = vmatpush.bf16.msra.mxu0 %v316
  %434 = vmatpush.bf16.msra.mxu0 %v314
  %435 = vmatpush.bf16.msra.mxu0 %v312
  %436 = vmatpush.bf16.msra.mxu0 %v310
  %437 = vmatpush.bf16.msra.mxu0 %v308
  %438 = vmatpush.bf16.msra.mxu0 %v306
  %439 = vmatpush.bf16.msra.mxu0 %v304
  %440 = vmatmul.bf16.gmra.mxu0 %v104
  %v441 = vpop.f32.mrf.mxu0
  %v442 = vadd.f32 %v94, %v441
  %v443 = vpop.f32.mrf.mxu0
  %444 = vdwg.mxu0
  %445 = vmatpush.bf16.msra.mxu0 %v334
  %446 = vmatpush.bf16.msra.mxu0 %v332
  %447 = vmatpush.bf16.msra.mxu0 %v330
  %448 = vmatpush.bf16.msra.mxu0 %v328
  %449 = vmatpush.bf16.msra.mxu0 %v326
  %450 = vmatpush.bf16.msra.mxu0 %v324
  %451 = vmatpush.bf16.msra.mxu0 %v322
  %452 = vmatpush.bf16.msra.mxu0 %v320
  %453 = vmatmul.bf16.gmra.mxu0 %v105
  %v454 = vpop.f32.mrf.mxu0
  %v455 = vadd.f32 %v442, %v454
  %v456 = vpop.f32.mrf.mxu0
  %457 = vdwg.mxu0
  %458 = vmatpush.bf16.msra.mxu0 %v350
  %459 = vmatpush.bf16.msra.mxu0 %v348
  %460 = vmatpush.bf16.msra.mxu0 %v346
  %461 = vmatpush.bf16.msra.mxu0 %v344
  %462 = vmatpush.bf16.msra.mxu0 %v342
  %463 = vmatpush.bf16.msra.mxu0 %v340
  %464 = vmatpush.bf16.msra.mxu0 %v338
  %465 = vmatpush.bf16.msra.mxu0 %v336
  %466 = vmatmul.bf16.gmra.mxu0 %v106
  %v467 = vpop.f32.mrf.mxu0
  %v468 = vadd.f32 %v455, %v467
  %v469 = vpop.f32.mrf.mxu0
  %470 = vdwg.mxu0
  %471 = vmatpush.bf16.msra.mxu0 %v366
  %472 = vmatpush.bf16.msra.mxu0 %v364
  %473 = vmatpush.bf16.msra.mxu0 %v362
  %474 = vmatpush.bf16.msra.mxu0 %v360
  %475 = vmatpush.bf16.msra.mxu0 %v358
  %476 = vmatpush.bf16.msra.mxu0 %v356
  %477 = vmatpush.bf16.msra.mxu0 %v354
  %478 = vmatpush.bf16.msra.mxu0 %v352
  %479 = vmatmul.bf16.gmra.mxu0 %v107
  %v480 = vpop.f32.mrf.mxu0
  %v481 = vadd.f32 %v468, %v480
  %v482 = vpop.f32.mrf.mxu0
  %483 = vdwg.mxu0
  %484 = vmatpush.bf16.msra.mxu0 %v319
  %485 = vmatpush.bf16.msra.mxu0 %v317
  %486 = vmatpush.bf16.msra.mxu0 %v315
  %487 = vmatpush.bf16.msra.mxu0 %v313
  %488 = vmatpush.bf16.msra.mxu0 %v311
  %489 = vmatpush.bf16.msra.mxu0 %v309
  %490 = vmatpush.bf16.msra.mxu0 %v307
  %491 = vmatpush.bf16.msra.mxu0 %v305
  %492 = vmatmul.bf16.gmra.mxu0 %v104
  %v493 = vpop.f32.mrf.mxu0
  %v494 = vadd.f32 %v95, %v493
  %v495 = vpop.f32.mrf.mxu0
  %496 = vdwg.mxu0
  %497 = vmatpush.bf16.msra.mxu0 %v335
  %498 = vmatpush.bf16.msra.mxu0 %v333
  %499 = vmatpush.bf16.msra.mxu0 %v331
  %500 = vmatpush.bf16.msra.mxu0 %v329
  %501 = vmatpush.bf16.msra.mxu0 %v327
  %502 = vmatpush.bf16.msra.mxu0 %v325
  %503 = vmatpush.bf16.msra.mxu0 %v323
  %504 = vmatpush.bf16.msra.mxu0 %v321
  %505 = vmatmul.bf16.gmra.mxu0 %v105
  %v506 = vpop.f32.mrf.mxu0
  %v507 = vadd.f32 %v494, %v506
  %v508 = vpop.f32.mrf.mxu0
  %509 = vdwg.mxu0
  %510 = vmatpush.bf16.msra.mxu0 %v351
  %511 = vmatpush.bf16.msra.mxu0 %v349
  %512 = vmatpush.bf16.msra.mxu0 %v347
  %513 = vmatpush.bf16.msra.mxu0 %v345
  %514 = vmatpush.bf16.msra.mxu0 %v343
  %515 = vmatpush.bf16.msra.mxu0 %v341
  %516 = vmatpush.bf16.msra.mxu0 %v339
  %517 = vmatpush.bf16.msra.mxu0 %v337
  %518 = vmatmul.bf16.gmra.mxu0 %v106
  %v519 = vpop.f32.mrf.mxu0
  %v520 = vadd.f32 %v507, %v519
  %v521 = vpop.f32.mrf.mxu0
  %522 = vdwg.mxu0
  %523 = vmatpush.bf16.msra.mxu0 %v367
  %524 = vmatpush.bf16.msra.mxu0 %v365
  %525 = vmatpush.bf16.msra.mxu0 %v363
  %526 = vmatpush.bf16.msra.mxu0 %v361
  %527 = vmatpush.bf16.msra.mxu0 %v359
  %528 = vmatpush.bf16.msra.mxu0 %v357
  %529 = vmatpush.bf16.msra.mxu0 %v355
  %530 = vmatpush.bf16.msra.mxu0 %v353
  %531 = vmatmul.bf16.gmra.mxu0 %v107
  %v532 = vpop.f32.mrf.mxu0
  %v533 = vadd.f32 %v520, %v532
  %v534 = vpop.f32.mrf.mxu0
  %535 = vdwg.mxu0
  %v536 = vmax.f32 %v481, 0.0
  %v537 = vmax.f32 %v533, 0.0
  %v538 = vpack.c.bf16 %v536, %v536
  %v539 = vpack.c.bf16 %v537, %v537
  %v540 = vld [vmem:[%s3] sm:$0xf]
  %v541 = vld [vmem:[%s3 + $0x4] sm:$0xf]
  %v542 = vld [vmem:[%s3 + $0x8] sm:$0xf]
  %v543 = vld [vmem:[%s3 + $0xc] sm:$0xf]
  %v544 = vld [vmem:[%s3 + $0x10] sm:$0xf]
  %v545 = vld [vmem:[%s3 + $0x14] sm:$0xf]
  %v546 = vld [vmem:[%s3 + $0x18] sm:$0xf]
  %v547 = vld [vmem:[%s3 + $0x1c] sm:$0xf]
  %v548 = vld [vmem:[%s3 + $0x20] sm:$0xf]
  %v549 = vld [vmem:[%s3 + $0x24] sm:$0xf]
  %v550 = vld [vmem:[%s3 + $0x28] sm:$0xf]
  %v551 = vld [vmem:[%s3 + $0x2c] sm:$0xf]
  %v552 = vld [vmem:[%s3 + $0x30] sm:$0xf]
  %v553 = vld [vmem:[%s3 + $0x34] sm:$0xf]
  %v554 = vld [vmem:[%s3 + $0x38] sm:$0xf]
  %v555 = vld [vmem:[%s3 + $0x3c] sm:$0xf]
  %v556 = vld [vmem:[%s3 + $0x40] sm:$0xf]
  %v557 = vld [vmem:[%s3 + $0x44] sm:$0xf]
  %v558 = vld [vmem:[%s3 + $0x48] sm:$0xf]
  %v559 = vld [vmem:[%s3 + $0x4c] sm:$0xf]
  %v560 = vld [vmem:[%s3 + $0x50] sm:$0xf]
  %v561 = vld [vmem:[%s3 + $0x54] sm:$0xf]
  %v562 = vld [vmem:[%s3 + $0x58] sm:$0xf]
  %v563 = vld [vmem:[%s3 + $0x5c] sm:$0xf]
  %v564 = vld [vmem:[%s3 + $0x60] sm:$0xf]
  %v565 = vld [vmem:[%s3 + $0x64] sm:$0xf]
  %v566 = vld [vmem:[%s3 + $0x68] sm:$0xf]
  %v567 = vld [vmem:[%s3 + $0x6c] sm:$0xf]
  %v568 = vld [vmem:[%s3 + $0x70] sm:$0xf]
  %v569 = vld [vmem:[%s3 + $0x74] sm:$0xf]
  %v570 = vld [vmem:[%s3 + $0x78] sm:$0xf]
  %v571 = vld [vmem:[%s3 + $0x7c] sm:$0xf]
  %v572 = vld [vmem:[%s4] sm:$0x1]
  %v574 = vperm.slane %v572, 0
  %v608 = vunpack.c.l.b16 %v540
  %v609 = vunpack.c.l.b16 %v541
  %v610 = vunpack.c.l.b16 %v542
  %v611 = vunpack.c.l.b16 %v543
  %v612 = vunpack.c.l.b16 %v544
  %v613 = vunpack.c.l.b16 %v545
  %v614 = vunpack.c.l.b16 %v546
  %v615 = vunpack.c.l.b16 %v547
  %v616 = vunpack.c.l.b16 %v548
  %v617 = vunpack.c.l.b16 %v549
  %v618 = vunpack.c.l.b16 %v550
  %v619 = vunpack.c.l.b16 %v551
  %v620 = vunpack.c.l.b16 %v552
  %v621 = vunpack.c.l.b16 %v553
  %v622 = vunpack.c.l.b16 %v554
  %v623 = vunpack.c.l.b16 %v555
  %v624 = vunpack.c.l.b16 %v556
  %v625 = vunpack.c.l.b16 %v557
  %v626 = vunpack.c.l.b16 %v558
  %v627 = vunpack.c.l.b16 %v559
  %v628 = vunpack.c.l.b16 %v560
  %v629 = vunpack.c.l.b16 %v561
  %v630 = vunpack.c.l.b16 %v562
  %v631 = vunpack.c.l.b16 %v563
  %v632 = vunpack.c.l.b16 %v564
  %v633 = vunpack.c.l.b16 %v565
  %v634 = vunpack.c.l.b16 %v566
  %v635 = vunpack.c.l.b16 %v567
  %v636 = vunpack.c.l.b16 %v568
  %v637 = vunpack.c.l.b16 %v569
  %v638 = vunpack.c.l.b16 %v570
  %v639 = vunpack.c.l.b16 %v571
  %v640 = vpack.c.b16 %v609, %v608
  %v641 = vpack.c.b16 %v611, %v610
  %v642 = vpack.c.b16 %v613, %v612
  %v643 = vpack.c.b16 %v615, %v614
  %v644 = vpack.c.b16 %v617, %v616
  %v645 = vpack.c.b16 %v619, %v618
  %v646 = vpack.c.b16 %v621, %v620
  %v647 = vpack.c.b16 %v623, %v622
  %v648 = vpack.c.b16 %v625, %v624
  %v649 = vpack.c.b16 %v627, %v626
  %v650 = vpack.c.b16 %v629, %v628
  %v651 = vpack.c.b16 %v631, %v630
  %v652 = vpack.c.b16 %v633, %v632
  %v653 = vpack.c.b16 %v635, %v634
  %v654 = vpack.c.b16 %v637, %v636
  %v655 = vpack.c.b16 %v639, %v638
  %672 = vmatpush.bf16.msra.mxu0 %v647
  %673 = vmatpush.bf16.msra.mxu0 %v646
  %674 = vmatpush.bf16.msra.mxu0 %v645
  %675 = vmatpush.bf16.msra.mxu0 %v644
  %676 = vmatpush.bf16.msra.mxu0 %v643
  %677 = vmatpush.bf16.msra.mxu0 %v642
  %678 = vmatpush.bf16.msra.mxu0 %v641
  %679 = vmatpush.bf16.msra.mxu0 %v640
  %680 = vmatmul.bf16.gmra.mxu0 %v538
  %v681 = vpop.f32.mrf.mxu0
  %v682 = vadd.f32 %v574, %v681
  %v683 = vpop.f32.mrf.mxu0
  %684 = vdwg.mxu0
  %685 = vmatpush.bf16.msra.mxu0 %v655
  %686 = vmatpush.bf16.msra.mxu0 %v654
  %687 = vmatpush.bf16.msra.mxu0 %v653
  %688 = vmatpush.bf16.msra.mxu0 %v652
  %689 = vmatpush.bf16.msra.mxu0 %v651
  %690 = vmatpush.bf16.msra.mxu0 %v650
  %691 = vmatpush.bf16.msra.mxu0 %v649
  %692 = vmatpush.bf16.msra.mxu0 %v648
  %693 = vmatmul.bf16.gmra.mxu0 %v539
  %v694 = vpop.f32.mrf.mxu0
  %v695 = vadd.f32 %v682, %v694
  %v696 = vpop.f32.mrf.mxu0
  %697 = vdwg.mxu0
  %v698 = vmax.f32 %v695, 0.0
  %v699 = vpack.c.bf16 %v698, %v698
  %v700 = vld [vmem:[%s5] sm:$0xf]
  %v701 = vld [vmem:[%s5 + $0x4] sm:$0xf]
  %v702 = vld [vmem:[%s5 + $0x8] sm:$0xf]
  %v703 = vld [vmem:[%s5 + $0xc] sm:$0xf]
  %v704 = vld [vmem:[%s5 + $0x10] sm:$0xf]
  %v705 = vld [vmem:[%s5 + $0x14] sm:$0xf]
  %v706 = vld [vmem:[%s5 + $0x18] sm:$0xf]
  %v707 = vld [vmem:[%s5 + $0x1c] sm:$0xf]
  %v708 = vld [vmem:[%s5 + $0x20] sm:$0xf]
  %v709 = vld [vmem:[%s5 + $0x24] sm:$0xf]
  %v710 = vld [vmem:[%s5 + $0x28] sm:$0xf]
  %v711 = vld [vmem:[%s5 + $0x2c] sm:$0xf]
  %v712 = vld [vmem:[%s5 + $0x30] sm:$0xf]
  %v713 = vld [vmem:[%s5 + $0x34] sm:$0xf]
  %v714 = vld [vmem:[%s5 + $0x38] sm:$0xf]
  %v715 = vld [vmem:[%s5 + $0x3c] sm:$0xf]
  %v716 = vld [vmem:[%s6] sm:$0x1]
  %v718 = vperm.slane %v716, 0
  %v736 = vunpack.c.l.b16 %v700
  %v737 = vunpack.c.l.b16 %v701
  %v738 = vunpack.c.l.b16 %v702
  %v739 = vunpack.c.l.b16 %v703
  %v740 = vunpack.c.l.b16 %v704
  %v741 = vunpack.c.l.b16 %v705
  %v742 = vunpack.c.l.b16 %v706
  %v743 = vunpack.c.l.b16 %v707
  %v744 = vunpack.c.l.b16 %v708
  %v745 = vunpack.c.l.b16 %v709
  %v746 = vunpack.c.l.b16 %v710
  %v747 = vunpack.c.l.b16 %v711
  %v748 = vunpack.c.l.b16 %v712
  %v749 = vunpack.c.l.b16 %v713
  %v750 = vunpack.c.l.b16 %v714
  %v751 = vunpack.c.l.b16 %v715
  %v752 = vpack.c.b16 %v737, %v736
  %v753 = vpack.c.b16 %v739, %v738
  %v754 = vpack.c.b16 %v741, %v740
  %v755 = vpack.c.b16 %v743, %v742
  %v756 = vpack.c.b16 %v745, %v744
  %v757 = vpack.c.b16 %v747, %v746
  %v758 = vpack.c.b16 %v749, %v748
  %v759 = vpack.c.b16 %v751, %v750
  %768 = vmatpush.bf16.msra.mxu0 %v759
  %769 = vmatpush.bf16.msra.mxu0 %v758
  %770 = vmatpush.bf16.msra.mxu0 %v757
  %771 = vmatpush.bf16.msra.mxu0 %v756
  %772 = vmatpush.bf16.msra.mxu0 %v755
  %773 = vmatpush.bf16.msra.mxu0 %v754
  %774 = vmatpush.bf16.msra.mxu0 %v753
  %775 = vmatpush.bf16.msra.mxu0 %v752
  %776 = vmatmul.bf16.gmra.mxu0 %v699
  %v777 = vpop.f32.mrf.mxu0
  %v778 = vadd.f32 %v718, %v777
  %v779 = vpop.f32.mrf.mxu0
  %780 = vdwg.mxu0
  %781 = vst [vmem:[%s7] sm:$0xff] %v778
  // Predicated region
  $region30: #{lenet_forward.5} parent=0 // pred_check
    _
  $region31: #{lenet_forward.5} parent=0 // pred_check_branch
    %783 = sbr.rel (0) target = $region33
  $region32: #{lenet_forward.5} parent=0 // pred_region
    _
  $region33: #{lenet_forward.5} parent=0 // pred_fallthru
    _
  // Predicated region
  $region34: #{lenet_forward.5} parent=0 // pred_check
    _
  $region35: #{lenet_forward.5} parent=0 // pred_check_branch
    %785 = sbr.rel (0) target = $region37
  $region36: #{lenet_forward.5} parent=0 // pred_region
    _
  $region37: #{lenet_forward.5} parent=0 // pred_fallthru
    _

</llo_original>
